<compile_context>
chip_gen: v7x
topology: tpu7x:2x2x1
jax: 0.10.0
libtpu: 0.0.40
codegen_flags: <defaults>
</compile_context>

<pallas_src>
import math
import numpy as np
import jax
import jax.numpy as jnp
from jax import lax
from jax.experimental import pallas as pl
from jax.experimental.pallas import tpu as pltpu

# ---------------- static configuration (mirrors AMPBlock.__init__) ----------------
D_RATES = (1, 3, 5)          # dilation_rates
S = len(D_RATES)
K = 3                        # Conv1d kernel_size
LPF_KS = 6                   # LowPassFilter kernel_size
LPF_HALF = LPF_KS // 2       # 3 -> actual FIR length = 7
N_TAPS = 2 * LPF_HALF + 1    # 7

_PAD = 8                     # halo columns needed: max(dilation)=5, FIR half=3 -> 5; use 8
_OFF = 128                   # left margin so the center scratch writes are lane-aligned


def _build_lowpass_filter():
    """Replicates LowPassFilter._build_filter (cutoff=0.5, kernel_size=6)."""
    cutoff = 0.5
    t = np.arange(-LPF_HALF, LPF_HALF + 1, dtype=np.float32)
    # torch.kaiser_window(7) == periodic Kaiser window, beta=12.0
    window = np.kaiser(2 * LPF_HALF + 2, 12.0)[: 2 * LPF_HALF + 1].astype(np.float32)
    sinc = np.sin(2.0 * np.pi * cutoff * t) / (np.pi * t + 1e-8)
    sinc[LPF_HALF] = 2.0 * cutoff
    fk = window * sinc
    fk = fk / fk.sum()
    return fk.astype(np.float32)  # shape (7,)


LPF = _build_lowpass_filter()    # non-learnable buffer -> baked in as compile-time constants


# ------------------------------- Pallas kernel -------------------------------------
def _make_kernel(C, T, use_bf16):
    lpf = [float(v) for v in LPF]

    def mm(w, v):
        # (C, C) @ (C, T) on the MXU; bf16 inputs + f32 accumulation when enabled.
        if use_bf16:
            v = v.astype(jnp.bfloat16)
        return jnp.dot(w, v, preferred_element_type=jnp.float32)

    def kernel(x_ref, w_ref, b_ref, a_ref, o_ref, pad_ref):
        # x_ref:   (C, T)                    one batch element (batch dim squeezed)
        # w_ref:   (S, K, C, C)              conv weights, w[i, k, c_out, c_in]
        # b_ref:   (S, C, 1)                 conv biases
        # a_ref:   (S, C, 1)                 snake alphas
        # o_ref:   (C, T)                    output block
        # pad_ref: (C, _OFF + T + _PAD) f32  zero-padded staging scratch for conv/FIR taps
        #
        # Zero only the halo strips that taps can read (never written afterwards).
        pad_ref[:, _OFF - _PAD:_OFF] = jnp.zeros((C, _PAD), jnp.float32)
        pad_ref[:, _OFF + T:_OFF + T + _PAD] = jnp.zeros((C, _PAD), jnp.float32)

        x = x_ref[...].astype(jnp.float32)
        residual = x

        # TODO(synk): for production sizes turn this unrolled S=3 stage loop into an
        # "arbitrary" grid axis (residual carried in a resident output block) to bound
        # vreg live ranges and keep only one stage's weights resident.
        for i, d in enumerate(D_RATES):
            # --- Snake activation: x + (1/alpha) * sin(alpha * x)^2 (per-channel alpha) ---
            alpha = a_ref[i]                                   # (C, 1)
            s = jnp.sin(alpha * x)
            y = x + (1.0 / alpha) * (s * s)                    # exact reciprocal: (C,1) only

            # --- dilated Conv1d(C, C, kernel=3, dilation=d, padding=d) ------------------
            # Stage y in the zero-padded scratch; taps are statically-offset slices
            # (zero padding at the sequence boundaries comes from the zeroed halo strips).
            pad_ref[:, _OFF:_OFF + T] = y                      # lane-aligned store
            left = pad_ref[:, _OFF - d:_OFF - d + T]           # y[t - d] (0 outside)
            right = pad_ref[:, _OFF + d:_OFF + d + T]          # y[t + d] (0 outside)
            conv = (mm(w_ref[i, 0], left)
                    + mm(w_ref[i, 1], y)
                    + mm(w_ref[i, 2], right)
                    + b_ref[i])

            # --- depthwise 7-tap low-pass FIR via the same padded scratch ----------------
            pad_ref[:, _OFF:_OFF + T] = conv
            lp = conv * lpf[LPF_HALF]                          # center tap
            for j in range(N_TAPS):
                if j == LPF_HALF:
                    continue
                off = j - LPF_HALF
                lp = lp + lpf[j] * pad_ref[:, _OFF + off:_OFF + off + T]

            # --- residual add -------------------------------------------------------------
            x = lp + residual
            residual = x

        o_ref[...] = x.astype(o_ref.dtype)

    return kernel


# ------------------------------- wrapper --------------------------------------------
def _vmem_limit_bytes(C, T, use_bf16):
    blk = C * T * 4
    w_bytes = S * K * C * C * (2 if use_bf16 else 4)
    scratch = C * (_OFF + T + _PAD) * 4
    # ~10 live (C, T) f32 temporaries per unrolled stage + double-buffered in/out blocks.
    est = 14 * blk + scratch + w_bytes + 4 * S * C * 4
    return int(min(64 << 20, max(8 << 20, 2 * est)))


def amp_block_forward(x, conv_w, conv_b, alpha):
    """x: (B, C, T) f32; conv_w: (S, K, C_out, C_in); conv_b, alpha: (S, C, 1)."""
    B, C, T = x.shape
    # LowPassFilter takes the no-transpose branch when T > C (filters along time).
    assert T > C, "kernel implements the T > C branch of LowPassFilter"
    # TODO(synk): C >= T branch of LowPassFilter (filters along the channel axis) not implemented.
    # TODO(synk): for production T (>= ~2048 at C=512) add a time-tile grid axis with halo
    # handling so each (C, T_tile) block fits comfortably in VMEM (esp. v7x 64 MiB).

    use_bf16 = C >= 128                        # bf16-native MXU path; toy C=8 stays f32
    w_pass = conv_w.astype(jnp.bfloat16) if use_bf16 else conv_w

    out = pl.pallas_call(
        _make_kernel(C, T, use_bf16),
        out_shape=jax.ShapeDtypeStruct((B, C, T), x.dtype),
        grid_spec=pltpu.PrefetchScalarGridSpec(
            num_scalar_prefetch=0,
            grid=(B,),
            in_specs=[
                pl.BlockSpec((None, C, T), lambda b: (b, 0, 0)),
                # Grid-invariant inputs: single-buffer to halve their VMEM footprint.
                pl.BlockSpec((S, K, C, C), lambda b: (0, 0, 0, 0),
                             pipeline_mode=pl.Buffered(1)),
                pl.BlockSpec((S, C, 1), lambda b: (0, 0, 0),
                             pipeline_mode=pl.Buffered(1)),
                pl.BlockSpec((S, C, 1), lambda b: (0, 0, 0),
                             pipeline_mode=pl.Buffered(1)),
            ],
            out_specs=pl.BlockSpec((None, C, T), lambda b: (b, 0, 0)),
            scratch_shapes=[pltpu.VMEM((C, _OFF + T + _PAD), jnp.float32)],
        ),
        compiler_params=pltpu.CompilerParams(
            dimension_semantics=("parallel",),
            vmem_limit_bytes=_vmem_limit_bytes(C, T, use_bf16),
        ),
    )(x, w_pass, conv_b, alpha)

    return out


# --------------------------- pure-JAX reference (for checking) ----------------------
def amp_block_reference(x, conv_w, conv_b, alpha):
    B, C, T = x.shape
    lpf = jnp.asarray(LPF)
    cur, res = x, x
    for i, d in enumerate(D_RATES):
        a = alpha[i]                                           # (C, 1)
        y = cur + (1.0 / a) * jnp.sin(a * cur) ** 2
        w = jnp.transpose(conv_w[i], (1, 2, 0))                # (C_out, C_in, K)
        out = lax.conv_general_dilated(
            y, w, window_strides=(1,), padding=[(d, d)], rhs_dilation=(d,),
            dimension_numbers=("NCH", "OIH", "NCH"),
            precision=lax.Precision.HIGHEST)
        out = out + conv_b[i][None]                            # (1, C, 1) broadcast
        lp_w = jnp.broadcast_to(lpf[None, None, :], (C, 1, N_TAPS))
        out = lax.conv_general_dilated(
            out, lp_w, window_strides=(1,), padding=[(LPF_HALF, LPF_HALF)],
            dimension_numbers=("NCH", "OIH", "NCH"), feature_group_count=C,
            precision=lax.Precision.HIGHEST)
        cur = out + res
        res = cur
    return cur


# ------------------------------------ main -------------------------------------------
if __name__ == "__main__":
    B, C, T = 4, 8, 128

    key = jax.random.PRNGKey(0)
    kx, kw, kb = jax.random.split(key, 3)

    # Conv1d default init bound: k = 1 / (C_in * kernel_size)
    bound = 1.0 / math.sqrt(C * K)
    conv_w = jax.random.uniform(kw, (S, K, C, C), jnp.float32, -bound, bound)
    conv_b = jax.random.uniform(kb, (S, C, 1), jnp.float32, -bound, bound)
    # SnakeActivation alpha_i = ones(C) * snake_alpha_init * (1 + 0.25 * i)
    alpha = jnp.stack(
        [jnp.full((C, 1), 1.0 * (1.0 + 0.25 * i), jnp.float32) for i in range(S)], axis=0)

    x = jax.random.normal(kx, (B, C, T), jnp.float32)

    out = jax.block_until_ready(amp_block_forward(x, conv_w, conv_b, alpha))
    ref = amp_block_reference(x, conv_w, conv_b, alpha)

    assert out.shape == (B, C, T)
    max_err = float(jnp.max(jnp.abs(out - ref)))
    assert jnp.allclose(out, ref, atol=1e-3, rtol=1e-3), f"max abs err = {max_err}"

    print("KERNEL_OK")
</pallas_src>

<mosaic_0001>
module attributes {stable_mosaic.version = 11 : i64} {
  func.func @kernel(%arg0: i32, %arg1: memref<1x8x128xf32, #tpu.memory_space<vmem>>, %arg2: memref<3x3x8x8xf32, #tpu.memory_space<vmem>>, %arg3: memref<3x8x1xf32, #tpu.memory_space<vmem>>, %arg4: memref<3x8x1xf32, #tpu.memory_space<vmem>>, %arg5: memref<1x8x128xf32, #tpu.memory_space<vmem>>, %arg6: memref<8x264xf32, #tpu.memory_space<vmem>>) attributes {dimension_semantics = [#tpu.dimension_semantics<parallel>], iteration_bounds = array<i64: 4>, scalar_prefetch = 0 : i64, scratch_operands = 1 : i64, tpu.core_type = #tpu.core_type<tc>, window_params = [{transform_indices = @transform_0, window_bounds = array<i64: 1, 8, 128>}, {pipeline_mode = #tpu.pipeline_mode<synchronous>, transform_indices = @transform_1, window_bounds = array<i64: 3, 3, 8, 8>}, {pipeline_mode = #tpu.pipeline_mode<synchronous>, transform_indices = @transform_2, window_bounds = array<i64: 3, 8, 1>}, {pipeline_mode = #tpu.pipeline_mode<synchronous>, transform_indices = @transform_3, window_bounds = array<i64: 3, 8, 1>}, {transform_indices = @transform_4, window_bounds = array<i64: 1, 8, 128>}]} {
    %cst = arith.constant 0.000000e+00 : f32
    %0 = vector.broadcast %cst : f32 to vector<8x8xf32>
    %c0 = arith.constant 0 : index
    %c120 = arith.constant 120 : index
    %1 = vector.load %arg6[%c0, %c120] : memref<8x264xf32, #tpu.memory_space<vmem>>, vector<8x8xf32>
    tpu.vector_store %arg6[%c0, %c120], %0 {strides = array<i32>} : memref<8x264xf32, #tpu.memory_space<vmem>>, vector<8x8xf32>,
    %cst_0 = arith.constant 0.000000e+00 : f32
    %2 = vector.broadcast %cst_0 : f32 to vector<8x8xf32>
    %c0_1 = arith.constant 0 : index
    %c256 = arith.constant 256 : index
    %3 = vector.load %arg6[%c0_1, %c256] : memref<8x264xf32, #tpu.memory_space<vmem>>, vector<8x8xf32>
    tpu.vector_store %arg6[%c0_1, %c256], %2 {strides = array<i32>} : memref<8x264xf32, #tpu.memory_space<vmem>>, vector<8x8xf32>,
    %c0_2 = arith.constant 0 : index
    %c0_3 = arith.constant 0 : index
    %c0_4 = arith.constant 0 : index
    %4 = vector.load %arg1[%c0_2, %c0_3, %c0_4] : memref<1x8x128xf32, #tpu.memory_space<vmem>>, vector<1x8x128xf32>
    %5 = vector.shape_cast %4 : vector<1x8x128xf32> to vector<8x128xf32>
    %c0_5 = arith.constant 0 : index
    %c0_6 = arith.constant 0 : index
    %c0_7 = arith.constant 0 : index
    %6 = vector.load %arg4[%c0_5, %c0_6, %c0_7] : memref<3x8x1xf32, #tpu.memory_space<vmem>>, vector<1x8x1xf32>
    %7 = vector.shape_cast %6 : vector<1x8x1xf32> to vector<8x1xf32>
    %8 = vector.broadcast %7 : vector<8x1xf32> to vector<8x128xf32>
    %9 = arith.mulf %8, %5 : vector<8x128xf32>
    %10 = math.sin %9 : vector<8x128xf32>
    %cst_8 = arith.constant 1.000000e+00 : f32
    %11 = vector.broadcast %cst_8 : f32 to vector<8x1xf32>
    %12 = arith.divf %11, %7 : vector<8x1xf32>
    %13 = arith.mulf %10, %10 : vector<8x128xf32>
    %14 = vector.broadcast %12 : vector<8x1xf32> to vector<8x128xf32>
    %15 = arith.mulf %14, %13 : vector<8x128xf32>
    %16 = arith.addf %5, %15 : vector<8x128xf32>
    %c0_9 = arith.constant 0 : index
    %c128 = arith.constant 128 : index
    %17 = vector.load %arg6[%c0_9, %c128] : memref<8x264xf32, #tpu.memory_space<vmem>>, vector<8x128xf32>
    tpu.vector_store %arg6[%c0_9, %c128], %16 {strides = array<i32>} : memref<8x264xf32, #tpu.memory_space<vmem>>, vector<8x128xf32>,
    %c0_10 = arith.constant 0 : index
    %c127 = arith.constant 127 : index
    %18 = vector.load %arg6[%c0_10, %c127] : memref<8x264xf32, #tpu.memory_space<vmem>>, vector<8x128xf32>
    %c0_11 = arith.constant 0 : index
    %c129 = arith.constant 129 : index
    %19 = vector.load %arg6[%c0_11, %c129] : memref<8x264xf32, #tpu.memory_space<vmem>>, vector<8x128xf32>
    %c0_12 = arith.constant 0 : index
    %c0_13 = arith.constant 0 : index
    %c0_14 = arith.constant 0 : index
    %c0_15 = arith.constant 0 : index
    %20 = vector.load %arg2[%c0_12, %c0_13, %c0_14, %c0_15] : memref<3x3x8x8xf32, #tpu.memory_space<vmem>>, vector<1x1x8x8xf32>
    %21 = vector.shape_cast %20 : vector<1x1x8x8xf32> to vector<8x8xf32>
    %cst_16 = arith.constant dense<0.000000e+00> : vector<8x128xf32>
    %22 = tpu.matmul %21, %18, %cst_16 {dimension_numbers = #tpu.dot_dimension_numbers<[1], [0], [0], [1], [0, 0, 1, 1], [], []>} : vector<8x8xf32>, vector<8x128xf32>, vector<8x128xf32> -> vector<8x128xf32>
    %c0_17 = arith.constant 0 : index
    %c1 = arith.constant 1 : index
    %c0_18 = arith.constant 0 : index
    %c0_19 = arith.constant 0 : index
    %23 = vector.load %arg2[%c0_17, %c1, %c0_18, %c0_19] : memref<3x3x8x8xf32, #tpu.memory_space<vmem>>, vector<1x1x8x8xf32>
    %24 = vector.shape_cast %23 : vector<1x1x8x8xf32> to vector<8x8xf32>
    %cst_20 = arith.constant dense<0.000000e+00> : vector<8x128xf32>
    %25 = tpu.matmul %24, %16, %cst_20 {dimension_numbers = #tpu.dot_dimension_numbers<[1], [0], [0], [1], [0, 0, 1, 1], [], []>} : vector<8x8xf32>, vector<8x128xf32>, vector<8x128xf32> -> vector<8x128xf32>
    %26 = arith.addf %22, %25 : vector<8x128xf32>
    %c0_21 = arith.constant 0 : index
    %c2 = arith.constant 2 : index
    %c0_22 = arith.constant 0 : index
    %c0_23 = arith.constant 0 : index
    %27 = vector.load %arg2[%c0_21, %c2, %c0_22, %c0_23] : memref<3x3x8x8xf32, #tpu.memory_space<vmem>>, vector<1x1x8x8xf32>
    %28 = vector.shape_cast %27 : vector<1x1x8x8xf32> to vector<8x8xf32>
    %cst_24 = arith.constant dense<0.000000e+00> : vector<8x128xf32>
    %29 = tpu.matmul %28, %19, %cst_24 {dimension_numbers = #tpu.dot_dimension_numbers<[1], [0], [0], [1], [0, 0, 1, 1], [], []>} : vector<8x8xf32>, vector<8x128xf32>, vector<8x128xf32> -> vector<8x128xf32>
    %30 = arith.addf %26, %29 : vector<8x128xf32>
    %c0_25 = arith.constant 0 : index
    %c0_26 = arith.constant 0 : index
    %c0_27 = arith.constant 0 : index
    %31 = vector.load %arg3[%c0_25, %c0_26, %c0_27] : memref<3x8x1xf32, #tpu.memory_space<vmem>>, vector<1x8x1xf32>
    %32 = vector.shape_cast %31 : vector<1x8x1xf32> to vector<8x1xf32>
    %33 = vector.broadcast %32 : vector<8x1xf32> to vector<8x128xf32>
    %34 = arith.addf %30, %33 : vector<8x128xf32>
    %c0_28 = arith.constant 0 : index
    %c128_29 = arith.constant 128 : index
    %35 = vector.load %arg6[%c0_28, %c128_29] : memref<8x264xf32, #tpu.memory_space<vmem>>, vector<8x128xf32>
    tpu.vector_store %arg6[%c0_28, %c128_29], %34 {strides = array<i32>} : memref<8x264xf32, #tpu.memory_space<vmem>>, vector<8x128xf32>,
    %cst_30 = arith.constant 1.000000e+00 : f32
    %36 = vector.broadcast %cst_30 : f32 to vector<8x128xf32>
    %37 = arith.mulf %34, %36 : vector<8x128xf32>
    %c0_31 = arith.constant 0 : index
    %c125 = arith.constant 125 : index
    %38 = vector.load %arg6[%c0_31, %c125] : memref<8x264xf32, #tpu.memory_space<vmem>>, vector<8x128xf32>
    %cst_32 = arith.constant -1.50241947E-13 : f32
    %39 = vector.broadcast %cst_32 : f32 to vector<8x128xf32>
    %40 = arith.mulf %39, %38 : vector<8x128xf32>
    %41 = arith.addf %37, %40 : vector<8x128xf32>
    %c0_33 = arith.constant 0 : index
    %c126 = arith.constant 126 : index
    %42 = vector.load %arg6[%c0_33, %c126] : memref<8x264xf32, #tpu.memory_space<vmem>>, vector<8x128xf32>
    %cst_34 = arith.constant 1.02586772E-9 : f32
    %43 = vector.broadcast %cst_34 : f32 to vector<8x128xf32>
    %44 = arith.mulf %43, %42 : vector<8x128xf32>
    %45 = arith.addf %41, %44 : vector<8x128xf32>
    %c0_35 = arith.constant 0 : index
    %c127_36 = arith.constant 127 : index
    %46 = vector.load %arg6[%c0_35, %c127_36] : memref<8x264xf32, #tpu.memory_space<vmem>>, vector<8x128xf32>
    %cst_37 = arith.constant -1.03593516E-8 : f32
    %47 = vector.broadcast %cst_37 : f32 to vector<8x128xf32>
    %48 = arith.mulf %47, %46 : vector<8x128xf32>
    %49 = arith.addf %45, %48 : vector<8x128xf32>
    %c0_38 = arith.constant 0 : index
    %c129_39 = arith.constant 129 : index
    %50 = vector.load %arg6[%c0_38, %c129_39] : memref<8x264xf32, #tpu.memory_space<vmem>>, vector<8x128xf32>
    %cst_40 = arith.constant -2.78275341E-8 : f32
    %51 = vector.broadcast %cst_40 : f32 to vector<8x128xf32>
    %52 = arith.mulf %51, %50 : vector<8x128xf32>
    %53 = arith.addf %49, %52 : vector<8x128xf32>
    %c0_41 = arith.constant 0 : index
    %c130 = arith.constant 130 : index
    %54 = vector.load %arg6[%c0_41, %c130] : memref<8x264xf32, #tpu.memory_space<vmem>>, vector<8x128xf32>
    %cst_42 = arith.constant 1.03593516E-8 : f32
    %55 = vector.broadcast %cst_42 : f32 to vector<8x128xf32>
    %56 = arith.mulf %55, %54 : vector<8x128xf32>
    %57 = arith.addf %53, %56 : vector<8x128xf32>
    %c0_43 = arith.constant 0 : index
    %c131 = arith.constant 131 : index
    %58 = vector.load %arg6[%c0_43, %c131] : memref<8x264xf32, #tpu.memory_space<vmem>>, vector<8x128xf32>
    %cst_44 = arith.constant -9.328880e-11 : f32
    %59 = vector.broadcast %cst_44 : f32 to vector<8x128xf32>
    %60 = arith.mulf %59, %58 : vector<8x128xf32>
    %61 = arith.addf %57, %60 : vector<8x128xf32>
    %62 = arith.addf %61, %5 : vector<8x128xf32>
    %c1_45 = arith.constant 1 : index
    %c0_46 = arith.constant 0 : index
    %c0_47 = arith.constant 0 : index
    %63 = vector.load %arg4[%c1_45, %c0_46, %c0_47] : memref<3x8x1xf32, #tpu.memory_space<vmem>>, vector<1x8x1xf32>
    %64 = vector.shape_cast %63 : vector<1x8x1xf32> to vector<8x1xf32>
    %65 = vector.broadcast %64 : vector<8x1xf32> to vector<8x128xf32>
    %66 = arith.mulf %65, %62 : vector<8x128xf32>
    %67 = math.sin %66 : vector<8x128xf32>
    %cst_48 = arith.constant 1.000000e+00 : f32
    %68 = vector.broadcast %cst_48 : f32 to vector<8x1xf32>
    %69 = arith.divf %68, %64 : vector<8x1xf32>
    %70 = arith.mulf %67, %67 : vector<8x128xf32>
    %71 = vector.broadcast %69 : vector<8x1xf32> to vector<8x128xf32>
    %72 = arith.mulf %71, %70 : vector<8x128xf32>
    %73 = arith.addf %62, %72 : vector<8x128xf32>
    %c0_49 = arith.constant 0 : index
    %c128_50 = arith.constant 128 : index
    %74 = vector.load %arg6[%c0_49, %c128_50] : memref<8x264xf32, #tpu.memory_space<vmem>>, vector<8x128xf32>
    tpu.vector_store %arg6[%c0_49, %c128_50], %73 {strides = array<i32>} : memref<8x264xf32, #tpu.memory_space<vmem>>, vector<8x128xf32>,
    %c0_51 = arith.constant 0 : index
    %c125_52 = arith.constant 125 : index
    %75 = vector.load %arg6[%c0_51, %c125_52] : memref<8x264xf32, #tpu.memory_space<vmem>>, vector<8x128xf32>
    %c0_53 = arith.constant 0 : index
    %c131_54 = arith.constant 131 : index
    %76 = vector.load %arg6[%c0_53, %c131_54] : memref<8x264xf32, #tpu.memory_space<vmem>>, vector<8x128xf32>
    %c1_55 = arith.constant 1 : index
    %c0_56 = arith.constant 0 : index
    %c0_57 = arith.constant 0 : index
    %c0_58 = arith.constant 0 : index
    %77 = vector.load %arg2[%c1_55, %c0_56, %c0_57, %c0_58] : memref<3x3x8x8xf32, #tpu.memory_space<vmem>>, vector<1x1x8x8xf32>
    %78 = vector.shape_cast %77 : vector<1x1x8x8xf32> to vector<8x8xf32>
    %cst_59 = arith.constant dense<0.000000e+00> : vector<8x128xf32>
    %79 = tpu.matmul %78, %75, %cst_59 {dimension_numbers = #tpu.dot_dimension_numbers<[1], [0], [0], [1], [0, 0, 1, 1], [], []>} : vector<8x8xf32>, vector<8x128xf32>, vector<8x128xf32> -> vector<8x128xf32>
    %c1_60 = arith.constant 1 : index
    %c1_61 = arith.constant 1 : index
    %c0_62 = arith.constant 0 : index
    %c0_63 = arith.constant 0 : index
    %80 = vector.load %arg2[%c1_60, %c1_61, %c0_62, %c0_63] : memref<3x3x8x8xf32, #tpu.memory_space<vmem>>, vector<1x1x8x8xf32>
    %81 = vector.shape_cast %80 : vector<1x1x8x8xf32> to vector<8x8xf32>
    %cst_64 = arith.constant dense<0.000000e+00> : vector<8x128xf32>
    %82 = tpu.matmul %81, %73, %cst_64 {dimension_numbers = #tpu.dot_dimension_numbers<[1], [0], [0], [1], [0, 0, 1, 1], [], []>} : vector<8x8xf32>, vector<8x128xf32>, vector<8x128xf32> -> vector<8x128xf32>
    %83 = arith.addf %79, %82 : vector<8x128xf32>
    %c1_65 = arith.constant 1 : index
    %c2_66 = arith.constant 2 : index
    %c0_67 = arith.constant 0 : index
    %c0_68 = arith.constant 0 : index
    %84 = vector.load %arg2[%c1_65, %c2_66, %c0_67, %c0_68] : memref<3x3x8x8xf32, #tpu.memory_space<vmem>>, vector<1x1x8x8xf32>
    %85 = vector.shape_cast %84 : vector<1x1x8x8xf32> to vector<8x8xf32>
    %cst_69 = arith.constant dense<0.000000e+00> : vector<8x128xf32>
    %86 = tpu.matmul %85, %76, %cst_69 {dimension_numbers = #tpu.dot_dimension_numbers<[1], [0], [0], [1], [0, 0, 1, 1], [], []>} : vector<8x8xf32>, vector<8x128xf32>, vector<8x128xf32> -> vector<8x128xf32>
    %87 = arith.addf %83, %86 : vector<8x128xf32>
    %c1_70 = arith.constant 1 : index
    %c0_71 = arith.constant 0 : index
    %c0_72 = arith.constant 0 : index
    %88 = vector.load %arg3[%c1_70, %c0_71, %c0_72] : memref<3x8x1xf32, #tpu.memory_space<vmem>>, vector<1x8x1xf32>
    %89 = vector.shape_cast %88 : vector<1x8x1xf32> to vector<8x1xf32>
    %90 = vector.broadcast %89 : vector<8x1xf32> to vector<8x128xf32>
    %91 = arith.addf %87, %90 : vector<8x128xf32>
    %c0_73 = arith.constant 0 : index
    %c128_74 = arith.constant 128 : index
    %92 = vector.load %arg6[%c0_73, %c128_74] : memref<8x264xf32, #tpu.memory_space<vmem>>, vector<8x128xf32>
    tpu.vector_store %arg6[%c0_73, %c128_74], %91 {strides = array<i32>} : memref<8x264xf32, #tpu.memory_space<vmem>>, vector<8x128xf32>,
    %cst_75 = arith.constant 1.000000e+00 : f32
    %93 = vector.broadcast %cst_75 : f32 to vector<8x128xf32>
    %94 = arith.mulf %91, %93 : vector<8x128xf32>
    %c0_76 = arith.constant 0 : index
    %c125_77 = arith.constant 125 : index
    %95 = vector.load %arg6[%c0_76, %c125_77] : memref<8x264xf32, #tpu.memory_space<vmem>>, vector<8x128xf32>
    %cst_78 = arith.constant -1.50241947E-13 : f32
    %96 = vector.broadcast %cst_78 : f32 to vector<8x128xf32>
    %97 = arith.mulf %96, %95 : vector<8x128xf32>
    %98 = arith.addf %94, %97 : vector<8x128xf32>
    %c0_79 = arith.constant 0 : index
    %c126_80 = arith.constant 126 : index
    %99 = vector.load %arg6[%c0_79, %c126_80] : memref<8x264xf32, #tpu.memory_space<vmem>>, vector<8x128xf32>
    %cst_81 = arith.constant 1.02586772E-9 : f32
    %100 = vector.broadcast %cst_81 : f32 to vector<8x128xf32>
    %101 = arith.mulf %100, %99 : vector<8x128xf32>
    %102 = arith.addf %98, %101 : vector<8x128xf32>
    %c0_82 = arith.constant 0 : index
    %c127_83 = arith.constant 127 : index
    %103 = vector.load %arg6[%c0_82, %c127_83] : memref<8x264xf32, #tpu.memory_space<vmem>>, vector<8x128xf32>
    %cst_84 = arith.constant -1.03593516E-8 : f32
    %104 = vector.broadcast %cst_84 : f32 to vector<8x128xf32>
    %105 = arith.mulf %104, %103 : vector<8x128xf32>
    %106 = arith.addf %102, %105 : vector<8x128xf32>
    %c0_85 = arith.constant 0 : index
    %c129_86 = arith.constant 129 : index
    %107 = vector.load %arg6[%c0_85, %c129_86] : memref<8x264xf32, #tpu.memory_space<vmem>>, vector<8x128xf32>
    %cst_87 = arith.constant -2.78275341E-8 : f32
    %108 = vector.broadcast %cst_87 : f32 to vector<8x128xf32>
    %109 = arith.mulf %108, %107 : vector<8x128xf32>
    %110 = arith.addf %106, %109 : vector<8x128xf32>
    %c0_88 = arith.constant 0 : index
    %c130_89 = arith.constant 130 : index
    %111 = vector.load %arg6[%c0_88, %c130_89] : memref<8x264xf32, #tpu.memory_space<vmem>>, vector<8x128xf32>
    %cst_90 = arith.constant 1.03593516E-8 : f32
    %112 = vector.broadcast %cst_90 : f32 to vector<8x128xf32>
    %113 = arith.mulf %112, %111 : vector<8x128xf32>
    %114 = arith.addf %110, %113 : vector<8x128xf32>
    %c0_91 = arith.constant 0 : index
    %c131_92 = arith.constant 131 : index
    %115 = vector.load %arg6[%c0_91, %c131_92] : memref<8x264xf32, #tpu.memory_space<vmem>>, vector<8x128xf32>
    %cst_93 = arith.constant -9.328880e-11 : f32
    %116 = vector.broadcast %cst_93 : f32 to vector<8x128xf32>
    %117 = arith.mulf %116, %115 : vector<8x128xf32>
    %118 = arith.addf %114, %117 : vector<8x128xf32>
    %119 = arith.addf %118, %62 : vector<8x128xf32>
    %c2_94 = arith.constant 2 : index
    %c0_95 = arith.constant 0 : index
    %c0_96 = arith.constant 0 : index
    %120 = vector.load %arg4[%c2_94, %c0_95, %c0_96] : memref<3x8x1xf32, #tpu.memory_space<vmem>>, vector<1x8x1xf32>
    %121 = vector.shape_cast %120 : vector<1x8x1xf32> to vector<8x1xf32>
    %122 = vector.broadcast %121 : vector<8x1xf32> to vector<8x128xf32>
    %123 = arith.mulf %122, %119 : vector<8x128xf32>
    %124 = math.sin %123 : vector<8x128xf32>
    %cst_97 = arith.constant 1.000000e+00 : f32
    %125 = vector.broadcast %cst_97 : f32 to vector<8x1xf32>
    %126 = arith.divf %125, %121 : vector<8x1xf32>
    %127 = arith.mulf %124, %124 : vector<8x128xf32>
    %128 = vector.broadcast %126 : vector<8x1xf32> to vector<8x128xf32>
    %129 = arith.mulf %128, %127 : vector<8x128xf32>
    %130 = arith.addf %119, %129 : vector<8x128xf32>
    %c0_98 = arith.constant 0 : index
    %c128_99 = arith.constant 128 : index
    %131 = vector.load %arg6[%c0_98, %c128_99] : memref<8x264xf32, #tpu.memory_space<vmem>>, vector<8x128xf32>
    tpu.vector_store %arg6[%c0_98, %c128_99], %130 {strides = array<i32>} : memref<8x264xf32, #tpu.memory_space<vmem>>, vector<8x128xf32>,
    %c0_100 = arith.constant 0 : index
    %c123 = arith.constant 123 : index
    %132 = vector.load %arg6[%c0_100, %c123] : memref<8x264xf32, #tpu.memory_space<vmem>>, vector<8x128xf32>
    %c0_101 = arith.constant 0 : index
    %c133 = arith.constant 133 : index
    %133 = vector.load %arg6[%c0_101, %c133] : memref<8x264xf32, #tpu.memory_space<vmem>>, vector<8x128xf32>
    %c2_102 = arith.constant 2 : index
    %c0_103 = arith.constant 0 : index
    %c0_104 = arith.constant 0 : index
    %c0_105 = arith.constant 0 : index
    %134 = vector.load %arg2[%c2_102, %c0_103, %c0_104, %c0_105] : memref<3x3x8x8xf32, #tpu.memory_space<vmem>>, vector<1x1x8x8xf32>
    %135 = vector.shape_cast %134 : vector<1x1x8x8xf32> to vector<8x8xf32>
    %cst_106 = arith.constant dense<0.000000e+00> : vector<8x128xf32>
    %136 = tpu.matmul %135, %132, %cst_106 {dimension_numbers = #tpu.dot_dimension_numbers<[1], [0], [0], [1], [0, 0, 1, 1], [], []>} : vector<8x8xf32>, vector<8x128xf32>, vector<8x128xf32> -> vector<8x128xf32>
    %c2_107 = arith.constant 2 : index
    %c1_108 = arith.constant 1 : index
    %c0_109 = arith.constant 0 : index
    %c0_110 = arith.constant 0 : index
    %137 = vector.load %arg2[%c2_107, %c1_108, %c0_109, %c0_110] : memref<3x3x8x8xf32, #tpu.memory_space<vmem>>, vector<1x1x8x8xf32>
    %138 = vector.shape_cast %137 : vector<1x1x8x8xf32> to vector<8x8xf32>
    %cst_111 = arith.constant dense<0.000000e+00> : vector<8x128xf32>
    %139 = tpu.matmul %138, %130, %cst_111 {dimension_numbers = #tpu.dot_dimension_numbers<[1], [0], [0], [1], [0, 0, 1, 1], [], []>} : vector<8x8xf32>, vector<8x128xf32>, vector<8x128xf32> -> vector<8x128xf32>
    %140 = arith.addf %136, %139 : vector<8x128xf32>
    %c2_112 = arith.constant 2 : index
    %c2_113 = arith.constant 2 : index
    %c0_114 = arith.constant 0 : index
    %c0_115 = arith.constant 0 : index
    %141 = vector.load %arg2[%c2_112, %c2_113, %c0_114, %c0_115] : memref<3x3x8x8xf32, #tpu.memory_space<vmem>>, vector<1x1x8x8xf32>
    %142 = vector.shape_cast %141 : vector<1x1x8x8xf32> to vector<8x8xf32>
    %cst_116 = arith.constant dense<0.000000e+00> : vector<8x128xf32>
    %143 = tpu.matmul %142, %133, %cst_116 {dimension_numbers = #tpu.dot_dimension_numbers<[1], [0], [0], [1], [0, 0, 1, 1], [], []>} : vector<8x8xf32>, vector<8x128xf32>, vector<8x128xf32> -> vector<8x128xf32>
    %144 = arith.addf %140, %143 : vector<8x128xf32>
    %c2_117 = arith.constant 2 : index
    %c0_118 = arith.constant 0 : index
    %c0_119 = arith.constant 0 : index
    %145 = vector.load %arg3[%c2_117, %c0_118, %c0_119] : memref<3x8x1xf32, #tpu.memory_space<vmem>>, vector<1x8x1xf32>
    %146 = vector.shape_cast %145 : vector<1x8x1xf32> to vector<8x1xf32>
    %147 = vector.broadcast %146 : vector<8x1xf32> to vector<8x128xf32>
    %148 = arith.addf %144, %147 : vector<8x128xf32>
    %c0_120 = arith.constant 0 : index
    %c128_121 = arith.constant 128 : index
    %149 = vector.load %arg6[%c0_120, %c128_121] : memref<8x264xf32, #tpu.memory_space<vmem>>, vector<8x128xf32>
    tpu.vector_store %arg6[%c0_120, %c128_121], %148 {strides = array<i32>} : memref<8x264xf32, #tpu.memory_space<vmem>>, vector<8x128xf32>,
    %cst_122 = arith.constant 1.000000e+00 : f32
    %150 = vector.broadcast %cst_122 : f32 to vector<8x128xf32>
    %151 = arith.mulf %148, %150 : vector<8x128xf32>
    %c0_123 = arith.constant 0 : index
    %c125_124 = arith.constant 125 : index
    %152 = vector.load %arg6[%c0_123, %c125_124] : memref<8x264xf32, #tpu.memory_space<vmem>>, vector<8x128xf32>
    %cst_125 = arith.constant -1.50241947E-13 : f32
    %153 = vector.broadcast %cst_125 : f32 to vector<8x128xf32>
    %154 = arith.mulf %153, %152 : vector<8x128xf32>
    %155 = arith.addf %151, %154 : vector<8x128xf32>
    %c0_126 = arith.constant 0 : index
    %c126_127 = arith.constant 126 : index
    %156 = vector.load %arg6[%c0_126, %c126_127] : memref<8x264xf32, #tpu.memory_space<vmem>>, vector<8x128xf32>
    %cst_128 = arith.constant 1.02586772E-9 : f32
    %157 = vector.broadcast %cst_128 : f32 to vector<8x128xf32>
    %158 = arith.mulf %157, %156 : vector<8x128xf32>
    %159 = arith.addf %155, %158 : vector<8x128xf32>
    %c0_129 = arith.constant 0 : index
    %c127_130 = arith.constant 127 : index
    %160 = vector.load %arg6[%c0_129, %c127_130] : memref<8x264xf32, #tpu.memory_space<vmem>>, vector<8x128xf32>
    %cst_131 = arith.constant -1.03593516E-8 : f32
    %161 = vector.broadcast %cst_131 : f32 to vector<8x128xf32>
    %162 = arith.mulf %161, %160 : vector<8x128xf32>
    %163 = arith.addf %159, %162 : vector<8x128xf32>
    %c0_132 = arith.constant 0 : index
    %c129_133 = arith.constant 129 : index
    %164 = vector.load %arg6[%c0_132, %c129_133] : memref<8x264xf32, #tpu.memory_space<vmem>>, vector<8x128xf32>
    %cst_134 = arith.constant -2.78275341E-8 : f32
    %165 = vector.broadcast %cst_134 : f32 to vector<8x128xf32>
    %166 = arith.mulf %165, %164 : vector<8x128xf32>
    %167 = arith.addf %163, %166 : vector<8x128xf32>
    %c0_135 = arith.constant 0 : index
    %c130_136 = arith.constant 130 : index
    %168 = vector.load %arg6[%c0_135, %c130_136] : memref<8x264xf32, #tpu.memory_space<vmem>>, vector<8x128xf32>
    %cst_137 = arith.constant 1.03593516E-8 : f32
    %169 = vector.broadcast %cst_137 : f32 to vector<8x128xf32>
    %170 = arith.mulf %169, %168 : vector<8x128xf32>
    %171 = arith.addf %167, %170 : vector<8x128xf32>
    %c0_138 = arith.constant 0 : index
    %c131_139 = arith.constant 131 : index
    %172 = vector.load %arg6[%c0_138, %c131_139] : memref<8x264xf32, #tpu.memory_space<vmem>>, vector<8x128xf32>
    %cst_140 = arith.constant -9.328880e-11 : f32
    %173 = vector.broadcast %cst_140 : f32 to vector<8x128xf32>
    %174 = arith.mulf %173, %172 : vector<8x128xf32>
    %175 = arith.addf %171, %174 : vector<8x128xf32>
    %176 = arith.addf %175, %119 : vector<8x128xf32>
    %c0_141 = arith.constant 0 : index
    %c0_142 = arith.constant 0 : index
    %c0_143 = arith.constant 0 : index
    %177 = vector.load %arg5[%c0_141, %c0_142, %c0_143] : memref<1x8x128xf32, #tpu.memory_space<vmem>>, vector<1x8x128xf32>
    %178 = vector.shape_cast %177 : vector<1x8x128xf32> to vector<8x128xf32>
    %179 = vector.shape_cast %176 : vector<8x128xf32> to vector<1x8x128xf32>
    tpu.vector_store %arg5[%c0_141, %c0_142, %c0_143], %179 {strides = array<i32>} : memref<1x8x128xf32, #tpu.memory_space<vmem>>, vector<1x8x128xf32>,
    return
  }
  func.func @transform_0(%arg0: i32) -> (i32, i32, i32) {
    %c0_i32 = arith.constant 0 : i32
    %c0_i32_0 = arith.constant 0 : i32
    %c0_i32_1 = arith.constant 0 : i32
    return %arg0, %c0_i32, %c0_i32_0 : i32, i32, i32
  }
  func.func @transform_1(%arg0: i32) -> (i32, i32, i32, i32) {
    %c0_i32 = arith.constant 0 : i32
    %c0_i32_0 = arith.constant 0 : i32
    %c0_i32_1 = arith.constant 0 : i32
    %c0_i32_2 = arith.constant 0 : i32
    %c0_i32_3 = arith.constant 0 : i32
    return %c0_i32, %c0_i32_0, %c0_i32_1, %c0_i32_2 : i32, i32, i32, i32
  }
  func.func @transform_2(%arg0: i32) -> (i32, i32, i32) {
    %c0_i32 = arith.constant 0 : i32
    %c0_i32_0 = arith.constant 0 : i32
    %c0_i32_1 = arith.constant 0 : i32
    %c0_i32_2 = arith.constant 0 : i32
    return %c0_i32, %c0_i32_0, %c0_i32_1 : i32, i32, i32
  }
  func.func @transform_3(%arg0: i32) -> (i32, i32, i32) {
    %c0_i32 = arith.constant 0 : i32
    %c0_i32_0 = arith.constant 0 : i32
    %c0_i32_1 = arith.constant 0 : i32
    %c0_i32_2 = arith.constant 0 : i32
    return %c0_i32, %c0_i32_0, %c0_i32_1 : i32, i32, i32
  }
  func.func @transform_4(%arg0: i32) -> (i32, i32, i32) {
    %c0_i32 = arith.constant 0 : i32
    %c0_i32_0 = arith.constant 0 : i32
    %c0_i32_1 = arith.constant 0 : i32
    return %arg0, %c0_i32, %c0_i32_0 : i32, i32, i32
  }
}

</mosaic_0001>

<llo_original>
// kernel: tpu_custom_call.1
$region0: #{tpu_custom_call.1}
  #allocation0 [shape = 'u32[]', space=smem, size = 0x4, offset = 0x4, fixed_abs, tag = 'smem constant byte address 0x4 - core index']
  #allocation1 [shape = 'u32[144,128]{1,0:T(1,128)}', space=vmem, size = 0x12000, scoped, tag = 'internal scratch']
  #allocation2 [shape = 'f32[8,264]{1,0:T(8,128)}', space=vmem, size = 0x3000, scoped, tag = 'scratch operand']
  %s0 = inlined_call_operand.vmem [shape: f32[4,8,128], index: 0, kind: input, shape index: {}]
  %s1 = inlined_call_operand.hbm [shape: f32[3,3,8,8], index: 1, kind: input, shape index: {}]
  %s2 = inlined_call_operand.vmem [shape: f32[3,8,1], index: 2, kind: input, shape index: {}]
  %s3 = inlined_call_operand.vmem [shape: f32[3,8,1], index: 3, kind: input, shape index: {}]
  %s4 = inlined_call_operand.hbm [shape: f32[4,8,128], index: 4, kind: output, shape index: {}]
  %s5 = sld [smem:[#allocation0]]
  $region53: #{tpu_custom_call.1} parent=0
    _
  %s7 = ssub.s32 1, %s5
  %s8 = scalar_select 0, %s7, %s5
  $region1: #{tpu_custom_call.1} parent=0
    #allocation3 [shape = 'u8[36864]{0}', space=vmem, size = 0x9000, scoped, tag = 'input window, operand 1, single buffered']
    #allocation4 [shape = 's32[2]{0}', space=sflag, size = 0x8, scoped, tag = 'scoped memory for tpu_custom_call.1']
    #allocation5 [shape = 's32[2]{0}', space=sflag, size = 0x8, scoped, tag = 'scoped memory for tpu_custom_call.1']
    #allocation6 [shape = 'u8[8192]{0}', space=vmem, size = 0x2000, scoped, tag = 'output window, operand 0']
    %9 = vsyncpa [#allocation4], 0
    %10 = vsyncpa [#allocation5], 0
    %s11 = scalar_lea.sflag [#allocation5], 1
    %12 = vsyncpa %s11, 0
    loop: start=0, step=1, limit=6
    $region2: #{tpu_custom_call.1} parent=1 // loop_pre_header
      _
    $region3: #{tpu_custom_call.1} parent=1 // loop_header
      %s14 = sphi 0, %s18
      %p15 = scmp.ge.s32.totalorder %s14, 6
      %s24 = sphi 0, %s26
      %s27 = sphi 0, %s24
      %s28 = sphi 0, %s27
      %s44 = sphi 0, %s28
      %s48 = sphi 0, %s48
      %s50 = sphi 0, %s48
      %s51 = sphi 0, %s50
      %s65 = sphi 0, %s51
      %s69 = sphi 0, %s69
      %s71 = sphi 0, %s69
      %s72 = sphi 0, %s71
      %s86 = sphi 0, %s72
      %s90 = sphi 0, %s90
      %s92 = sphi 0, %s90
      %s93 = sphi 0, %s92
      %s107 = sphi 0, %s93
      %s113 = sphi 0, %s115
      %s116 = sphi 0, %s113
      %s117 = sphi 0, %s116
      %s133 = sphi 0, %s117
    $region4: #{tpu_custom_call.1} parent=1 // loop_header_branch
      %17 = sbr.rel (%p15) target = $region8
    $region5: #{tpu_custom_call.1} parent=1 // loop_body
      %s19 = ssub.s32 %s14, 1
      %s20 = ssub.s32 %s14, 2
      %s21 = sadd.s32 %s14, 1
      %s22 = ssub.s32 %s14, %s21
      %p23 = scmp.eq.s32.totalorder %s22, 0
      %s25 = sadd.s32 %s24, 1
      %s26 = scalar_select %p23, %s24, %s25
      %p29 = pneg %p23
      %p30 = scmp.eq.s32.totalorder %s14, 3
      %p31 = por %p29, %p30
      %p32 = scmp.ne.s32.totalorder %s24, %s27
      %p33 = scmp.eq.s32.totalorder %s14, 0
      %p34 = por %p32, %p33
      %p35 = scmp.ne.s32.totalorder %s24, %s27
      %p36 = scmp.eq.s32.totalorder %s19, 3
      %p37 = por %p35, %p36
      %p38 = scmp.ne.s32.totalorder %s27, %s28
      %p39 = scmp.eq.s32.totalorder %s19, 0
      %p40 = por %p38, %p39
      %p41 = scmp.ne.s32.totalorder %s27, %s28
      %p42 = scmp.eq.s32.totalorder %s20, 3
      %p43 = por %p41, %p42
      %p45 = scmp.ne.s32.totalorder %s28, %s44
      %p46 = scmp.eq.s32.totalorder %s20, 0
      %p47 = por %p45, %p46
      %s49 = sadd.s32 %s48, 1
      %p52 = scmp.eq.s32.totalorder %s14, 3
      %p53 = scmp.ne.s32.totalorder %s48, %s50
      %p54 = scmp.eq.s32.totalorder %s14, 0
      %p55 = por %p53, %p54
      %p56 = scmp.ne.s32.totalorder %s48, %s50
      %p57 = scmp.eq.s32.totalorder %s19, 3
      %p58 = por %p56, %p57
      %p59 = scmp.ne.s32.totalorder %s50, %s51
      %p60 = scmp.eq.s32.totalorder %s19, 0
      %p61 = por %p59, %p60
      %p62 = scmp.ne.s32.totalorder %s50, %s51
      %p63 = scmp.eq.s32.totalorder %s20, 3
      %p64 = por %p62, %p63
      %p66 = scmp.ne.s32.totalorder %s51, %s65
      %p67 = scmp.eq.s32.totalorder %s20, 0
      %p68 = por %p66, %p67
      %s70 = sadd.s32 %s69, 1
      %p73 = scmp.eq.s32.totalorder %s14, 3
      %p74 = scmp.ne.s32.totalorder %s69, %s71
      %p75 = scmp.eq.s32.totalorder %s14, 0
      %p76 = por %p74, %p75
      %p77 = scmp.ne.s32.totalorder %s69, %s71
      %p78 = scmp.eq.s32.totalorder %s19, 3
      %p79 = por %p77, %p78
      %p80 = scmp.ne.s32.totalorder %s71, %s72
      %p81 = scmp.eq.s32.totalorder %s19, 0
      %p82 = por %p80, %p81
      %p83 = scmp.ne.s32.totalorder %s71, %s72
      %p84 = scmp.eq.s32.totalorder %s20, 3
      %p85 = por %p83, %p84
      %p87 = scmp.ne.s32.totalorder %s72, %s86
      %p88 = scmp.eq.s32.totalorder %s20, 0
      %p89 = por %p87, %p88
      %s91 = sadd.s32 %s90, 1
      %p94 = scmp.eq.s32.totalorder %s14, 3
      %p95 = scmp.ne.s32.totalorder %s90, %s92
      %p96 = scmp.eq.s32.totalorder %s14, 0
      %p97 = por %p95, %p96
      %p98 = scmp.ne.s32.totalorder %s90, %s92
      %p99 = scmp.eq.s32.totalorder %s19, 3
      %p100 = por %p98, %p99
      %p101 = scmp.ne.s32.totalorder %s92, %s93
      %p102 = scmp.eq.s32.totalorder %s19, 0
      %p103 = por %p101, %p102
      %p104 = scmp.ne.s32.totalorder %s92, %s93
      %p105 = scmp.eq.s32.totalorder %s20, 3
      %p106 = por %p104, %p105
      %p108 = scmp.ne.s32.totalorder %s93, %s107
      %p109 = scmp.eq.s32.totalorder %s20, 0
      %p110 = por %p108, %p109
      %s111 = ssub.s32 %s14, %s21
      %p112 = scmp.eq.s32.totalorder %s111, 0
      %s114 = sadd.s32 %s113, 1
      %s115 = scalar_select %p112, %s113, %s114
      %p118 = pneg %p112
      %p119 = scmp.eq.s32.totalorder %s14, 3
      %p120 = por %p118, %p119
      %p121 = scmp.ne.s32.totalorder %s113, %s116
      %p122 = scmp.eq.s32.totalorder %s14, 0
      %p123 = por %p121, %p122
      %p124 = scmp.ne.s32.totalorder %s113, %s116
      %p125 = scmp.eq.s32.totalorder %s19, 3
      %p126 = por %p124, %p125
      %p127 = scmp.ne.s32.totalorder %s116, %s117
      %p128 = scmp.eq.s32.totalorder %s19, 0
      %p129 = por %p127, %p128
      %p130 = scmp.ne.s32.totalorder %s116, %s117
      %p131 = scmp.eq.s32.totalorder %s20, 3
      %p132 = por %p130, %p131
      %p134 = scmp.ne.s32.totalorder %s117, %s133
      %p135 = scmp.eq.s32.totalorder %s20, 0
      %p136 = por %p134, %p135
      %p137 = scmp.le.s32.totalorder 1, %s14
      %p138 = scmp.lt.s32.totalorder %s14, 5
      %p139 = pnand %p137, %p138
      %p140 = pneg %p139
      // Predicated region
      $region9: #{tpu_custom_call.1} parent=5 // pred_check
        _
      $region10: #{tpu_custom_call.1} parent=5 // pred_check_branch
        %142 = sbr.rel (%p139) target = $region12
      $region11: #{tpu_custom_call.1} parent=5 // pred_region
        %s143 = ssub.s32 %s14, 1
        // Predicated region
        $region13: #{tpu_custom_call.1} parent=11 // pred_check
          %p144 = pneg %p61
        $region14: #{tpu_custom_call.1} parent=11 // pred_check_branch
          %146 = sbr.rel (%p144) target = $region16
        $region15: #{tpu_custom_call.1} parent=11 // pred_region
          %s148 = ssub.s32 1152, 1152
          %149 = vsyncadd [#allocation4], %s148
          %s150 = sshll.u32 [#allocation3], 4
          %s151 = int_to_ptr.vmem [resolvable:$true] %s150
          %156 = dma.hbm_to_vmem [thread:$0]  %s1, 1152, %s151, [#allocation4], 128, 128, 8
        $region16: #{tpu_custom_call.1} parent=11 // pred_fallthru
          _
        // Predicated region
        $region17: #{tpu_custom_call.1} parent=11 // pred_check
          %p157 = pneg %p82
        $region18: #{tpu_custom_call.1} parent=11 // pred_check_branch
          %159 = sbr.rel (%p157) target = $region20
        $region19: #{tpu_custom_call.1} parent=11 // pred_region
          _
        $region20: #{tpu_custom_call.1} parent=11 // pred_fallthru
          _
        // Predicated region
        $region21: #{tpu_custom_call.1} parent=11 // pred_check
          %p160 = pneg %p103
        $region22: #{tpu_custom_call.1} parent=11 // pred_check_branch
          %162 = sbr.rel (%p160) target = $region24
        $region23: #{tpu_custom_call.1} parent=11 // pred_region
          _
        $region24: #{tpu_custom_call.1} parent=11 // pred_fallthru
          _
      $region12: #{tpu_custom_call.1} parent=5 // pred_fallthru
        _
      %p163 = scmp.lt.s32.totalorder %s14, 4
      // Predicated region
      $region25: #{tpu_custom_call.1} parent=5 // pred_check
        %p164 = pneg %p163
      $region26: #{tpu_custom_call.1} parent=5 // pred_check_branch
        %166 = sbr.rel (%p164) target = $region28
      $region27: #{tpu_custom_call.1} parent=5 // pred_region
        // Predicated region
        $region29: #{tpu_custom_call.1} parent=27 // pred_check
          %p167 = pneg %p34
        $region30: #{tpu_custom_call.1} parent=27 // pred_check_branch
          %169 = sbr.rel (%p167) target = $region32
        $region31: #{tpu_custom_call.1} parent=27 // pred_region
          %p170 = scmp.lt.s32.totalorder %s14, 3
          %s171 = scalar_select %p170, %s14, 3
          %s172 = smul.addr %s171, 8
          %s173 = scalar_lea.vmem %s0, %s172
        $region32: #{tpu_custom_call.1} parent=27 // pred_fallthru
          _
      $region28: #{tpu_custom_call.1} parent=5 // pred_fallthru
        _
      %p174 = scmp.le.s32.totalorder 1, %s14
      %p175 = scmp.lt.s32.totalorder %s14, 5
      %p176 = pnand %p174, %p175
      %p177 = pneg %p176
      // Predicated region
      $region33: #{tpu_custom_call.1} parent=5 // pred_check
        _
      $region34: #{tpu_custom_call.1} parent=5 // pred_check_branch
        %179 = sbr.rel (%p176) target = $region36
      $region35: #{tpu_custom_call.1} parent=5 // pred_region
        %s180 = ssub.s32 %s14, 1
        // Predicated region
        $region37: #{tpu_custom_call.1} parent=35 // pred_check
          %p181 = pneg %p61
        $region38: #{tpu_custom_call.1} parent=35 // pred_check_branch
          %183 = sbr.rel (%p181) target = $region40
        $region39: #{tpu_custom_call.1} parent=35 // pred_region
          %184 = dma.done [#allocation4], 1152
        $region40: #{tpu_custom_call.1} parent=35 // pred_fallthru
          _
        %p185 = scmp.lt.s32.totalorder %s19, 3
        %s186 = scalar_select %p185, %s19, 3
        %s187 = smul.addr %s186, 8
        %s188 = scalar_lea.vmem %s0, %s187
        %p189 = pneg %p40
        %p190 = pneg %p37
        %p191 = pneg %p61
        %p192 = pneg %p58
        %p193 = pneg %p82
        %p194 = pneg %p79
        %p195 = pneg %p103
        %p196 = pneg %p100
        %p197 = pneg %p129
        %p198 = pneg %p126
        %s199 = sand.u32 %s116, 1
        %s200 = scalar_lea.sflag [#allocation5], %s199
        %s201 = sand.u32 %s116, 1
        %s202 = smul.addr %s201, 8
        %s203 = scalar_lea.vmem [#allocation6], %s202
        %p204 = scmp.lt.s32.totalorder %s19, 3
        %s205 = scalar_select %p204, %s19, 3
        %s206 = smul.addr %s205, 8
        %s207 = scalar_lea.vmem %s0, %s206
        %vm208 = vcmask 1048512
        %209 = vst.msk [vmem:[#allocation2] sm:$0xff] %vm208, 0.0
        %vm210 = vcmask 64512
        %211 = vst.msk [vmem:[#allocation2 + $0x10] sm:$0xff] %vm210, 0.0
        %v212 = vld [vmem:[%s207] sm:$0xff]
        %v213 = vld [vmem:[%s3] sm:$0xff]
        %215 = vset.pattern.permute.xlu0 0
        %216 = vperm.xlu0 %215, %v213
        %v217 = vpop.permute.xlu0 %216
        %v219 = vmul.f32 %v217, %v212
        %v220 = vand.u32 2147483647, %v219
        %vm221 = vcmp.le.f32.partialorder %v220, 0.7853982
        %vm222 = vcmp.lt.s32.totalorder %v219, 0
        %v223 = vand.u32 %v219, 2139095040
        %v224 = vshrl.u32 %v223, 23
        %v225 = vsub.s32 %v224, 127
        %v226 = vand.u32 2147483647, %v219
        %v227 = vand.u32 %v226, 8388607
        %v228 = vor.u32 %v227, 8388608
        %v229 = vsub.s32 0, %v228
        %v230 = vadd.s32 %v225, 1
        %vm231 = vcmp.gt.s32.totalorder %v230, 0
        %v232 = vsel %vm231, %v230, 0
        %v233 = vshrl.u32 %v232, 5
        %v234 = vand.u32 %v232, 31
        %v235 = vsub.s32 32, %v234
        %v236 = vshrl.u32 683565275, %v235
        %v237 = vshll.u32 683565275, %v234
        %v238 = vshrl.u32 2475754826, %v235
        %v239 = vor.u32 %v237, %v238
        %v240 = vshll.u32 2475754826, %v234
        %v241 = vshrl.u32 2131351028, %v235
        %v242 = vor.u32 %v240, %v241
        %v243 = vshll.u32 2131351028, %v234
        %v244 = vshrl.u32 2102212464, %v235
        %v245 = vor.u32 %v243, %v244
        %v246 = vshll.u32 2102212464, %v234
        %v247 = vshrl.u32 920167782, %v235
        %v248 = vor.u32 %v246, %v247
        %v249 = vshll.u32 920167782, %v234
        %v250 = vshrl.u32 1326507024, %v235
        %v251 = vor.u32 %v249, %v250
        %vm252 = vcmp.lt.s32.totalorder %v233, 1
        %vm253 = vcmp.lt.s32.totalorder %v233, 2
        %vm254 = vcmp.lt.s32.totalorder %v233, 3
        %vm255 = vcmp.lt.s32.totalorder %v233, 4
        %v256 = vsel %vm252, %v236, %v239
        %v257 = vsel %vm255, %v245, 2102212464
        %v258 = vsel %vm254, %v242, %v257
        %v259 = vsel %vm253, %v256, %v258
        %v260 = vsel %vm252, %v239, %v242
        %v261 = vsel %vm255, %v248, 920167782
        %v262 = vsel %vm254, %v245, %v261
        %v263 = vsel %vm253, %v260, %v262
        %v264 = vsel %vm252, %v242, %v245
        %v265 = vsel %vm255, %v251, 1326507024
        %v266 = vsel %vm254, %v248, %v265
        %v267 = vsel %vm253, %v264, %v266
        %v268 = vshll.u32 %v228, 8
        %v269 = vmul.u32.u64.compose %v268, %v267
        %v270 = vextract.low.u32 %v269
        %v271 = vextract.high.u32 %v269
        %v272 = vmul.u32.u64.compose %v268, %v263
        %v273 = vextract.low.u32 %v272
        %v274 = vextract.high.u32 %v272
        %v275 = vmul.u32 %v268, %v259
        %v276 = vadd.s32 %v271, %v273
        %vm277 = vc.u32 %v271, %v273
        %v278 = vadd.s32 %v274, 1
        %v279 = vsel %vm277, %v278, %v274
        %v280 = vadd.s32 %v275, %v279
        %v281 = vadd.s32 %v280, 536870912
        %v282 = vshrl.u32 %v281, 30
        %v283 = vshll.u32 %v282, 30
        %v284 = vsub.s32 %v280, %v283
        %vm285 = vcmp.lt.s32.totalorder %v284, 0
        %v286 = vsub.s32 0, %v284
        %v287 = vsel %vm285, %v286, %v284
        %v288 = vclz %v287
        %v289 = vsub.s32 %v288, 2
        %vm290 = vcmp.gt.s32.totalorder 0, %v289
        %v291 = vsel %vm290, 0, %v289
        %v292 = vsub.s32 32, %v291
        %v293 = vshll.u32 %v284, %v291
        %v294 = vshrl.u32 %v276, %v292
        %v295 = vor.u32 %v293, %v294
        %v296 = vsub.s32 4294967266, %v291
        %v297 = vadd.s32 %v296, 127
        %v298 = vshll.u32 %v297, 23
        %v299 = vor.u32 4788187, %v298
        %v300 = vand.u32 2147483647, %v299
        %v302 = vcvt.s32.f32 %v295
        %v303 = vmul.f32 %v302, %v300
        %v304 = vxor.u32 %v303, 2147483648
        %v305 = vsel %vm222, %v304, %v303
        %v306 = vsub.s32 4, %v282
        %v307 = vsel %vm222, %v306, %v282
        %v308 = vsel %vm221, %v219, %v305
        %v309 = vsel %vm221, 0, %v307
        %v310 = vcosq.f32.pop %v308
        %v311 = vsinq.f32.pop %v308
        %vm312 = vweird.f32 %v219
        %v313 = vadd.s32 %v309, 3
        %v314 = vand.u32 %v313, 3
        %vm315 = vcmp.lt.s32.totalorder %v314, 2
        %vm316 = vcmp.eq.s32.totalorder %v314, 0
        %v317 = vxor.u32 %v311, 2147483648
        %v318 = vsel %vm316, %v310, %v317
        %vm319 = vcmp.eq.s32.totalorder %v314, 2
        %v320 = vxor.u32 %v310, 2147483648
        %v321 = vsel %vm319, %v320, %v311
        %v322 = vsel %vm315, %v318, %v321
        %v323 = vsel %vm312, nan, %v322
        %v324 = vrcp.pop %v213
        %v325 = vmul.f32 1.0, %v324
        %v326 = vmul.f32 %v323, %v323
        %328 = vset.pattern.permute.xlu0 0
        %329 = vperm.xlu0 %328, %v325
        %v330 = vpop.permute.xlu0 %329
        %v332 = vmul.f32 %v330, %v326
        %v333 = vadd.f32 %v212, %v332
        %334 = vst [vmem:[#allocation2 + $0x8] sm:$0xff] %v333
        %v335 = vld [vmem:[#allocation2] sm:$0xff]
        %v336 = vld [vmem:[#allocation2 + $0x8] sm:$0xff]
        %v337 = vld [vmem:[#allocation2 + $0x10] sm:$0xff]
        %v338 = vld [vmem:[#allocation3] sm:$0xff]
        %s339 = scalar_lea.vmem [#allocation3], 8
        %v340 = vld [vmem:[%s339] sm:$0xff]
        %v342 = vsel %vm210, %v340, 0
        %344 = vmatprep.subr.mxu0 0.0
        %345 = vmatpush1.msra.mxu0 %v333
        %346 = vmatprep.subr.mxu0 0.0
        %347 = vmatpush1.msra.mxu0 0.0
        %348 = vmatprep.subr.mxu0 0.0
        %349 = vmatpush1.msra.mxu0 0.0
        %350 = vmatprep.subr.mxu0 0.0
        %351 = vmatpush1.msra.mxu0 0.0
        %352 = vmatprep.subr.mxu0 0.0
        %353 = vmatpush1.msra.mxu0 0.0
        %354 = vmatprep.subr.mxu0 0.0
        %355 = vmatpush1.msra.mxu0 0.0
        %356 = vmatprep.subr.mxu0 0.0
        %357 = vmatpush1.msra.mxu0 0.0
        %358 = vmatprep.subr.mxu0 0.0
        %359 = vmatpush1.msra.mxu0 0.0
        %360 = vmatprep.subr.mxu0 0.0
        %361 = vmatpush1.msra.mxu0 0.0
        %362 = vmatprep.subr.mxu0 0.0
        %363 = vmatpush1.msra.mxu0 0.0
        %364 = vmatprep.subr.mxu0 0.0
        %365 = vmatpush1.msra.mxu0 0.0
        %366 = vmatprep.subr.mxu0 0.0
        %367 = vmatpush1.msra.mxu0 0.0
        %368 = vmatprep.subr.mxu0 0.0
        %369 = vmatpush1.msra.mxu0 0.0
        %370 = vmatprep.subr.mxu0 0.0
        %371 = vmatpush1.msra.mxu0 0.0
        %372 = vmatprep.subr.mxu0 0.0
        %373 = vmatpush1.msra.mxu0 0.0
        %374 = vmatprep.subr.mxu0 0.0
        %375 = vmatpush1.msra.mxu0 0.0
        %376 = vmatprep.subr.mxu0 0.0
        %377 = vmatpush1.msra.mxu0 0.0
        %378 = vmatprep.subr.mxu0 0.0
        %379 = vmatpush1.msra.mxu0 0.0
        %380 = vmatprep.subr.mxu0 0.0
        %381 = vmatpush1.msra.mxu0 0.0
        %382 = vmatprep.subr.mxu0 0.0
        %383 = vmatpush1.msra.mxu0 0.0
        %384 = vmatprep.subr.mxu0 0.0
        %385 = vmatpush1.msra.mxu0 0.0
        %386 = vmatprep.subr.mxu0 0.0
        %387 = vmatpush1.msra.mxu0 0.0
        %388 = vmatprep.subr.mxu0 0.0
        %389 = vmatpush1.msra.mxu0 0.0
        %390 = vmatprep.subr.mxu0 0.0
        %391 = vmatpush1.msra.mxu0 0.0
        %392 = vmatprep.subr.mxu0 0.0
        %393 = vmatpush1.msra.mxu0 0.0
        %394 = vmatprep.subr.mxu0 0.0
        %395 = vmatpush1.msra.mxu0 0.0
        %396 = vmatprep.subr.mxu0 0.0
        %397 = vmatpush1.msra.mxu0 0.0
        %398 = vmatprep.subr.mxu0 0.0
        %399 = vmatpush1.msra.mxu0 0.0
        %400 = vmatprep.subr.mxu0 0.0
        %401 = vmatpush1.msra.mxu0 0.0
        %402 = vmatprep.subr.mxu0 0.0
        %403 = vmatpush1.msra.mxu0 0.0
        %404 = vmatprep.subr.mxu0 0.0
        %405 = vmatpush1.msra.mxu0 0.0
        %406 = vmatprep.subr.mxu0 0.0
        %407 = vmatpush1.msra.mxu0 0.0
        %408 = vmatprep.mubr.f32.mxu0 0.0
        %409 = vmatmul.mubr.f32.gmra.mrb[0].mxu0 %v342
        %v410 = vpop.f32.mrb[0].mxu0
        %v411 = vadd.f32 0.0, %v410
        %v412 = vpop.f32.mrb[0].mxu0
        %413 = vdwg.mxu0
        %416 = vrot.lane.b32.xlu0 %v335, 1
        %v417 = vpop.permute.xlu0 %416
        %418 = vrot.lane.b32.xlu0 %v336, 1
        %v419 = vpop.permute.xlu0 %418
        %vm420 = vcmask 7168
        %v421 = vsel %vm420, %v417, %v419
        %v424 = vsel %vm210, %v338, 0
        %426 = vmatprep.subr.mxu0 0.0
        %427 = vmatpush1.msra.mxu0 %v421
        %428 = vmatprep.subr.mxu0 0.0
        %429 = vmatpush1.msra.mxu0 0.0
        %430 = vmatprep.subr.mxu0 0.0
        %431 = vmatpush1.msra.mxu0 0.0
        %432 = vmatprep.subr.mxu0 0.0
        %433 = vmatpush1.msra.mxu0 0.0
        %434 = vmatprep.subr.mxu0 0.0
        %435 = vmatpush1.msra.mxu0 0.0
        %436 = vmatprep.subr.mxu0 0.0
        %437 = vmatpush1.msra.mxu0 0.0
        %438 = vmatprep.subr.mxu0 0.0
        %439 = vmatpush1.msra.mxu0 0.0
        %440 = vmatprep.subr.mxu0 0.0
        %441 = vmatpush1.msra.mxu0 0.0
        %442 = vmatprep.subr.mxu0 0.0
        %443 = vmatpush1.msra.mxu0 0.0
        %444 = vmatprep.subr.mxu0 0.0
        %445 = vmatpush1.msra.mxu0 0.0
        %446 = vmatprep.subr.mxu0 0.0
        %447 = vmatpush1.msra.mxu0 0.0
        %448 = vmatprep.subr.mxu0 0.0
        %449 = vmatpush1.msra.mxu0 0.0
        %450 = vmatprep.subr.mxu0 0.0
        %451 = vmatpush1.msra.mxu0 0.0
        %452 = vmatprep.subr.mxu0 0.0
        %453 = vmatpush1.msra.mxu0 0.0
        %454 = vmatprep.subr.mxu0 0.0
        %455 = vmatpush1.msra.mxu0 0.0
        %456 = vmatprep.subr.mxu0 0.0
        %457 = vmatpush1.msra.mxu0 0.0
        %458 = vmatprep.subr.mxu0 0.0
        %459 = vmatpush1.msra.mxu0 0.0
        %460 = vmatprep.subr.mxu0 0.0
        %461 = vmatpush1.msra.mxu0 0.0
        %462 = vmatprep.subr.mxu0 0.0
        %463 = vmatpush1.msra.mxu0 0.0
        %464 = vmatprep.subr.mxu0 0.0
        %465 = vmatpush1.msra.mxu0 0.0
        %466 = vmatprep.subr.mxu0 0.0
        %467 = vmatpush1.msra.mxu0 0.0
        %468 = vmatprep.subr.mxu0 0.0
        %469 = vmatpush1.msra.mxu0 0.0
        %470 = vmatprep.subr.mxu0 0.0
        %471 = vmatpush1.msra.mxu0 0.0
        %472 = vmatprep.subr.mxu0 0.0
        %473 = vmatpush1.msra.mxu0 0.0
        %474 = vmatprep.subr.mxu0 0.0
        %475 = vmatpush1.msra.mxu0 0.0
        %476 = vmatprep.subr.mxu0 0.0
        %477 = vmatpush1.msra.mxu0 0.0
        %478 = vmatprep.subr.mxu0 0.0
        %479 = vmatpush1.msra.mxu0 0.0
        %480 = vmatprep.subr.mxu0 0.0
        %481 = vmatpush1.msra.mxu0 0.0
        %482 = vmatprep.subr.mxu0 0.0
        %483 = vmatpush1.msra.mxu0 0.0
        %484 = vmatprep.subr.mxu0 0.0
        %485 = vmatpush1.msra.mxu0 0.0
        %486 = vmatprep.subr.mxu0 0.0
        %487 = vmatpush1.msra.mxu0 0.0
        %488 = vmatprep.subr.mxu0 0.0
        %489 = vmatpush1.msra.mxu0 0.0
        %490 = vmatprep.mubr.f32.mxu0 0.0
        %491 = vmatmul.mubr.f32.gmra.mrb[0].mxu0 %v424
        %v492 = vpop.f32.mrb[0].mxu0
        %v493 = vadd.f32 %v411, %v492
        %v494 = vpop.f32.mrb[0].mxu0
        %495 = vdwg.mxu0
        %s496 = scalar_lea.vmem [#allocation3], 16
        %v497 = vld [vmem:[%s496] sm:$0xff]
        %499 = vrot.lane.b32.xlu0 %v336, 127
        %v500 = vpop.permute.xlu0 %499
        %501 = vrot.lane.b32.xlu0 %v337, 127
        %v502 = vpop.permute.xlu0 %501
        %vm503 = vcmask 1039360
        %v504 = vsel %vm503, %v500, %v502
        %v507 = vsel %vm210, %v497, 0
        %509 = vmatprep.subr.mxu0 0.0
        %510 = vmatpush1.msra.mxu0 %v504
        %511 = vmatprep.subr.mxu0 0.0
        %512 = vmatpush1.msra.mxu0 0.0
        %513 = vmatprep.subr.mxu0 0.0
        %514 = vmatpush1.msra.mxu0 0.0
        %515 = vmatprep.subr.mxu0 0.0
        %516 = vmatpush1.msra.mxu0 0.0
        %517 = vmatprep.subr.mxu0 0.0
        %518 = vmatpush1.msra.mxu0 0.0
        %519 = vmatprep.subr.mxu0 0.0
        %520 = vmatpush1.msra.mxu0 0.0
        %521 = vmatprep.subr.mxu0 0.0
        %522 = vmatpush1.msra.mxu0 0.0
        %523 = vmatprep.subr.mxu0 0.0
        %524 = vmatpush1.msra.mxu0 0.0
        %525 = vmatprep.subr.mxu0 0.0
        %526 = vmatpush1.msra.mxu0 0.0
        %527 = vmatprep.subr.mxu0 0.0
        %528 = vmatpush1.msra.mxu0 0.0
        %529 = vmatprep.subr.mxu0 0.0
        %530 = vmatpush1.msra.mxu0 0.0
        %531 = vmatprep.subr.mxu0 0.0
        %532 = vmatpush1.msra.mxu0 0.0
        %533 = vmatprep.subr.mxu0 0.0
        %534 = vmatpush1.msra.mxu0 0.0
        %535 = vmatprep.subr.mxu0 0.0
        %536 = vmatpush1.msra.mxu0 0.0
        %537 = vmatprep.subr.mxu0 0.0
        %538 = vmatpush1.msra.mxu0 0.0
        %539 = vmatprep.subr.mxu0 0.0
        %540 = vmatpush1.msra.mxu0 0.0
        %541 = vmatprep.subr.mxu0 0.0
        %542 = vmatpush1.msra.mxu0 0.0
        %543 = vmatprep.subr.mxu0 0.0
        %544 = vmatpush1.msra.mxu0 0.0
        %545 = vmatprep.subr.mxu0 0.0
        %546 = vmatpush1.msra.mxu0 0.0
        %547 = vmatprep.subr.mxu0 0.0
        %548 = vmatpush1.msra.mxu0 0.0
        %549 = vmatprep.subr.mxu0 0.0
        %550 = vmatpush1.msra.mxu0 0.0
        %551 = vmatprep.subr.mxu0 0.0
        %552 = vmatpush1.msra.mxu0 0.0
        %553 = vmatprep.subr.mxu0 0.0
        %554 = vmatpush1.msra.mxu0 0.0
        %555 = vmatprep.subr.mxu0 0.0
        %556 = vmatpush1.msra.mxu0 0.0
        %557 = vmatprep.subr.mxu0 0.0
        %558 = vmatpush1.msra.mxu0 0.0
        %559 = vmatprep.subr.mxu0 0.0
        %560 = vmatpush1.msra.mxu0 0.0
        %561 = vmatprep.subr.mxu0 0.0
        %562 = vmatpush1.msra.mxu0 0.0
        %563 = vmatprep.subr.mxu0 0.0
        %564 = vmatpush1.msra.mxu0 0.0
        %565 = vmatprep.subr.mxu0 0.0
        %566 = vmatpush1.msra.mxu0 0.0
        %567 = vmatprep.subr.mxu0 0.0
        %568 = vmatpush1.msra.mxu0 0.0
        %569 = vmatprep.subr.mxu0 0.0
        %570 = vmatpush1.msra.mxu0 0.0
        %571 = vmatprep.subr.mxu0 0.0
        %572 = vmatpush1.msra.mxu0 0.0
        %573 = vmatprep.mubr.f32.mxu0 0.0
        %574 = vmatmul.mubr.f32.gmra.mrb[0].mxu0 %v507
        %v575 = vpop.f32.mrb[0].mxu0
        %v576 = vadd.f32 0.0, %v575
        %v577 = vpop.f32.mrb[0].mxu0
        %578 = vdwg.mxu0
        %v579 = vadd.f32 %v493, %v576
        %v580 = vld [vmem:[%s2] sm:$0xff]
        %582 = vset.pattern.permute.xlu0 0
        %583 = vperm.xlu0 %582, %v580
        %v584 = vpop.permute.xlu0 %583
        %v586 = vadd.f32 %v579, %v584
        %587 = vst [vmem:[#allocation2 + $0x8] sm:$0xff] %v586
        %v588 = vld [vmem:[#allocation2] sm:$0xff]
        %v589 = vld [vmem:[#allocation2 + $0x8] sm:$0xff]
        %v590 = vmul.f32 %v588, -1.5024195e-13
        %v591 = vmul.f32 %v589, -1.5024195e-13
        %594 = vrot.lane.b32.xlu0 %v590, 3
        %v595 = vpop.permute.xlu0 %594
        %596 = vrot.lane.b32.xlu0 %v591, 3
        %v597 = vpop.permute.xlu0 %596
        %vm598 = vcmask 23552
        %v599 = vsel %vm598, %v595, %v597
        %v601 = vadd.f32 %v586, %v599
        %v602 = vmul.f32 %v588, 1.0258677e-09
        %v603 = vmul.f32 %v589, 1.0258677e-09
        %606 = vrot.lane.b32.xlu0 %v602, 2
        %v607 = vpop.permute.xlu0 %606
        %608 = vrot.lane.b32.xlu0 %v603, 2
        %v609 = vpop.permute.xlu0 %608
        %vm610 = vcmask 15360
        %v611 = vsel %vm610, %v607, %v609
        %v613 = vadd.f32 %v601, %v611
        %v614 = vmul.f32 %v588, -1.0359352e-08
        %v615 = vmul.f32 %v589, -1.0359352e-08
        %618 = vrot.lane.b32.xlu0 %v614, 1
        %v619 = vpop.permute.xlu0 %618
        %620 = vrot.lane.b32.xlu0 %v615, 1
        %v621 = vpop.permute.xlu0 %620
        %v622 = vsel %vm420, %v619, %v621
        %v624 = vadd.f32 %v613, %v622
        %v625 = vld [vmem:[#allocation2 + $0x10] sm:$0xff]
        %v626 = vmul.f32 %v589, -2.7827534e-08
        %v627 = vmul.f32 %v625, -2.7827534e-08
        %630 = vrot.lane.b32.xlu0 %v626, 127
        %v631 = vpop.permute.xlu0 %630
        %632 = vrot.lane.b32.xlu0 %v627, 127
        %v633 = vpop.permute.xlu0 %632
        %v634 = vsel %vm503, %v631, %v633
        %v636 = vadd.f32 %v624, %v634
        %v637 = vmul.f32 %v589, 1.0359352e-08
        %v638 = vmul.f32 %v625, 1.0359352e-08
        %641 = vrot.lane.b32.xlu0 %v637, 126
        %v642 = vpop.permute.xlu0 %641
        %643 = vrot.lane.b32.xlu0 %v638, 126
        %v644 = vpop.permute.xlu0 %643
        %vm645 = vcmask 1031168
        %v646 = vsel %vm645, %v642, %v644
        %v648 = vadd.f32 %v636, %v646
        %v649 = vmul.f32 %v589, -9.32888e-11
        %v650 = vmul.f32 %v625, -9.32888e-11
        %653 = vrot.lane.b32.xlu0 %v649, 125
        %v654 = vpop.permute.xlu0 %653
        %655 = vrot.lane.b32.xlu0 %v650, 125
        %v656 = vpop.permute.xlu0 %655
        %vm657 = vcmask 1022976
        %v658 = vsel %vm657, %v654, %v656
        %v660 = vadd.f32 %v648, %v658
        %v661 = vadd.f32 %v660, %v212
        %s662 = scalar_lea.vmem %s3, 8
        %v663 = vld [vmem:[%s662] sm:$0xff]
        %665 = vset.pattern.permute.xlu0 0
        %666 = vperm.xlu0 %665, %v663
        %v667 = vpop.permute.xlu0 %666
        %v669 = vmul.f32 %v667, %v661
        %v670 = vand.u32 2147483647, %v669
        %vm671 = vcmp.le.f32.partialorder %v670, 0.7853982
        %vm672 = vcmp.lt.s32.totalorder %v669, 0
        %v673 = vand.u32 %v669, 2139095040
        %v674 = vshrl.u32 %v673, 23
        %v675 = vsub.s32 %v674, 127
        %v676 = vand.u32 2147483647, %v669
        %v677 = vand.u32 %v676, 8388607
        %v678 = vor.u32 %v677, 8388608
        %v679 = vsub.s32 0, %v678
        %v680 = vadd.s32 %v675, 1
        %vm681 = vcmp.gt.s32.totalorder %v680, 0
        %v682 = vsel %vm681, %v680, 0
        %v683 = vshrl.u32 %v682, 5
        %v684 = vand.u32 %v682, 31
        %v685 = vsub.s32 32, %v684
        %v686 = vshrl.u32 683565275, %v685
        %v687 = vshll.u32 683565275, %v684
        %v688 = vshrl.u32 2475754826, %v685
        %v689 = vor.u32 %v687, %v688
        %v690 = vshll.u32 2475754826, %v684
        %v691 = vshrl.u32 2131351028, %v685
        %v692 = vor.u32 %v690, %v691
        %v693 = vshll.u32 2131351028, %v684
        %v694 = vshrl.u32 2102212464, %v685
        %v695 = vor.u32 %v693, %v694
        %v696 = vshll.u32 2102212464, %v684
        %v697 = vshrl.u32 920167782, %v685
        %v698 = vor.u32 %v696, %v697
        %v699 = vshll.u32 920167782, %v684
        %v700 = vshrl.u32 1326507024, %v685
        %v701 = vor.u32 %v699, %v700
        %vm702 = vcmp.lt.s32.totalorder %v683, 1
        %vm703 = vcmp.lt.s32.totalorder %v683, 2
        %vm704 = vcmp.lt.s32.totalorder %v683, 3
        %vm705 = vcmp.lt.s32.totalorder %v683, 4
        %v706 = vsel %vm702, %v686, %v689
        %v707 = vsel %vm705, %v695, 2102212464
        %v708 = vsel %vm704, %v692, %v707
        %v709 = vsel %vm703, %v706, %v708
        %v710 = vsel %vm702, %v689, %v692
        %v711 = vsel %vm705, %v698, 920167782
        %v712 = vsel %vm704, %v695, %v711
        %v713 = vsel %vm703, %v710, %v712
        %v714 = vsel %vm702, %v692, %v695
        %v715 = vsel %vm705, %v701, 1326507024
        %v716 = vsel %vm704, %v698, %v715
        %v717 = vsel %vm703, %v714, %v716
        %v718 = vshll.u32 %v678, 8
        %v719 = vmul.u32.u64.compose %v718, %v717
        %v720 = vextract.low.u32 %v719
        %v721 = vextract.high.u32 %v719
        %v722 = vmul.u32.u64.compose %v718, %v713
        %v723 = vextract.low.u32 %v722
        %v724 = vextract.high.u32 %v722
        %v725 = vmul.u32 %v718, %v709
        %v726 = vadd.s32 %v721, %v723
        %vm727 = vc.u32 %v721, %v723
        %v728 = vadd.s32 %v724, 1
        %v729 = vsel %vm727, %v728, %v724
        %v730 = vadd.s32 %v725, %v729
        %v731 = vadd.s32 %v730, 536870912
        %v732 = vshrl.u32 %v731, 30
        %v733 = vshll.u32 %v732, 30
        %v734 = vsub.s32 %v730, %v733
        %vm735 = vcmp.lt.s32.totalorder %v734, 0
        %v736 = vsub.s32 0, %v734
        %v737 = vsel %vm735, %v736, %v734
        %v738 = vclz %v737
        %v739 = vsub.s32 %v738, 2
        %vm740 = vcmp.gt.s32.totalorder 0, %v739
        %v741 = vsel %vm740, 0, %v739
        %v742 = vsub.s32 32, %v741
        %v743 = vshll.u32 %v734, %v741
        %v744 = vshrl.u32 %v726, %v742
        %v745 = vor.u32 %v743, %v744
        %v746 = vsub.s32 4294967266, %v741
        %v747 = vadd.s32 %v746, 127
        %v748 = vshll.u32 %v747, 23
        %v749 = vor.u32 4788187, %v748
        %v750 = vand.u32 2147483647, %v749
        %v752 = vcvt.s32.f32 %v745
        %v753 = vmul.f32 %v752, %v750
        %v754 = vxor.u32 %v753, 2147483648
        %v755 = vsel %vm672, %v754, %v753
        %v756 = vsub.s32 4, %v732
        %v757 = vsel %vm672, %v756, %v732
        %v758 = vsel %vm671, %v669, %v755
        %v759 = vsel %vm671, 0, %v757
        %v760 = vcosq.f32.pop %v758
        %v761 = vsinq.f32.pop %v758
        %vm762 = vweird.f32 %v669
        %v763 = vadd.s32 %v759, 3
        %v764 = vand.u32 %v763, 3
        %vm765 = vcmp.lt.s32.totalorder %v764, 2
        %vm766 = vcmp.eq.s32.totalorder %v764, 0
        %v767 = vxor.u32 %v761, 2147483648
        %v768 = vsel %vm766, %v760, %v767
        %vm769 = vcmp.eq.s32.totalorder %v764, 2
        %v770 = vxor.u32 %v760, 2147483648
        %v771 = vsel %vm769, %v770, %v761
        %v772 = vsel %vm765, %v768, %v771
        %v773 = vsel %vm762, nan, %v772
        %v774 = vrcp.pop %v663
        %v775 = vmul.f32 1.0, %v774
        %v776 = vmul.f32 %v773, %v773
        %778 = vset.pattern.permute.xlu0 0
        %779 = vperm.xlu0 %778, %v775
        %v780 = vpop.permute.xlu0 %779
        %v782 = vmul.f32 %v780, %v776
        %v783 = vadd.f32 %v661, %v782
        %784 = vst [vmem:[#allocation2 + $0x8] sm:$0xff] %v783
        %v785 = vld [vmem:[#allocation2] sm:$0xff]
        %v786 = vld [vmem:[#allocation2 + $0x8] sm:$0xff]
        %v787 = vld [vmem:[#allocation2 + $0x10] sm:$0xff]
        %s788 = scalar_lea.vmem [#allocation3], 24
        %v789 = vld [vmem:[%s788] sm:$0xff]
        %s790 = scalar_lea.vmem [#allocation3], 32
        %v791 = vld [vmem:[%s790] sm:$0xff]
        %v793 = vsel %vm210, %v791, 0
        %795 = vmatprep.subr.mxu0 0.0
        %796 = vmatpush1.msra.mxu0 %v783
        %797 = vmatprep.subr.mxu0 0.0
        %798 = vmatpush1.msra.mxu0 0.0
        %799 = vmatprep.subr.mxu0 0.0
        %800 = vmatpush1.msra.mxu0 0.0
        %801 = vmatprep.subr.mxu0 0.0
        %802 = vmatpush1.msra.mxu0 0.0
        %803 = vmatprep.subr.mxu0 0.0
        %804 = vmatpush1.msra.mxu0 0.0
        %805 = vmatprep.subr.mxu0 0.0
        %806 = vmatpush1.msra.mxu0 0.0
        %807 = vmatprep.subr.mxu0 0.0
        %808 = vmatpush1.msra.mxu0 0.0
        %809 = vmatprep.subr.mxu0 0.0
        %810 = vmatpush1.msra.mxu0 0.0
        %811 = vmatprep.subr.mxu0 0.0
        %812 = vmatpush1.msra.mxu0 0.0
        %813 = vmatprep.subr.mxu0 0.0
        %814 = vmatpush1.msra.mxu0 0.0
        %815 = vmatprep.subr.mxu0 0.0
        %816 = vmatpush1.msra.mxu0 0.0
        %817 = vmatprep.subr.mxu0 0.0
        %818 = vmatpush1.msra.mxu0 0.0
        %819 = vmatprep.subr.mxu0 0.0
        %820 = vmatpush1.msra.mxu0 0.0
        %821 = vmatprep.subr.mxu0 0.0
        %822 = vmatpush1.msra.mxu0 0.0
        %823 = vmatprep.subr.mxu0 0.0
        %824 = vmatpush1.msra.mxu0 0.0
        %825 = vmatprep.subr.mxu0 0.0
        %826 = vmatpush1.msra.mxu0 0.0
        %827 = vmatprep.subr.mxu0 0.0
        %828 = vmatpush1.msra.mxu0 0.0
        %829 = vmatprep.subr.mxu0 0.0
        %830 = vmatpush1.msra.mxu0 0.0
        %831 = vmatprep.subr.mxu0 0.0
        %832 = vmatpush1.msra.mxu0 0.0
        %833 = vmatprep.subr.mxu0 0.0
        %834 = vmatpush1.msra.mxu0 0.0
        %835 = vmatprep.subr.mxu0 0.0
        %836 = vmatpush1.msra.mxu0 0.0
        %837 = vmatprep.subr.mxu0 0.0
        %838 = vmatpush1.msra.mxu0 0.0
        %839 = vmatprep.subr.mxu0 0.0
        %840 = vmatpush1.msra.mxu0 0.0
        %841 = vmatprep.subr.mxu0 0.0
        %842 = vmatpush1.msra.mxu0 0.0
        %843 = vmatprep.subr.mxu0 0.0
        %844 = vmatpush1.msra.mxu0 0.0
        %845 = vmatprep.subr.mxu0 0.0
        %846 = vmatpush1.msra.mxu0 0.0
        %847 = vmatprep.subr.mxu0 0.0
        %848 = vmatpush1.msra.mxu0 0.0
        %849 = vmatprep.subr.mxu0 0.0
        %850 = vmatpush1.msra.mxu0 0.0
        %851 = vmatprep.subr.mxu0 0.0
        %852 = vmatpush1.msra.mxu0 0.0
        %853 = vmatprep.subr.mxu0 0.0
        %854 = vmatpush1.msra.mxu0 0.0
        %855 = vmatprep.subr.mxu0 0.0
        %856 = vmatpush1.msra.mxu0 0.0
        %857 = vmatprep.subr.mxu0 0.0
        %858 = vmatpush1.msra.mxu0 0.0
        %859 = vmatprep.mubr.f32.mxu0 0.0
        %860 = vmatmul.mubr.f32.gmra.mrb[0].mxu0 %v793
        %v861 = vpop.f32.mrb[0].mxu0
        %v862 = vadd.f32 0.0, %v861
        %v863 = vpop.f32.mrb[0].mxu0
        %864 = vdwg.mxu0
        %867 = vrot.lane.b32.xlu0 %v785, 3
        %v868 = vpop.permute.xlu0 %867
        %869 = vrot.lane.b32.xlu0 %v786, 3
        %v870 = vpop.permute.xlu0 %869
        %v871 = vsel %vm598, %v868, %v870
        %v874 = vsel %vm210, %v789, 0
        %876 = vmatprep.subr.mxu0 0.0
        %877 = vmatpush1.msra.mxu0 %v871
        %878 = vmatprep.subr.mxu0 0.0
        %879 = vmatpush1.msra.mxu0 0.0
        %880 = vmatprep.subr.mxu0 0.0
        %881 = vmatpush1.msra.mxu0 0.0
        %882 = vmatprep.subr.mxu0 0.0
        %883 = vmatpush1.msra.mxu0 0.0
        %884 = vmatprep.subr.mxu0 0.0
        %885 = vmatpush1.msra.mxu0 0.0
        %886 = vmatprep.subr.mxu0 0.0
        %887 = vmatpush1.msra.mxu0 0.0
        %888 = vmatprep.subr.mxu0 0.0
        %889 = vmatpush1.msra.mxu0 0.0
        %890 = vmatprep.subr.mxu0 0.0
        %891 = vmatpush1.msra.mxu0 0.0
        %892 = vmatprep.subr.mxu0 0.0
        %893 = vmatpush1.msra.mxu0 0.0
        %894 = vmatprep.subr.mxu0 0.0
        %895 = vmatpush1.msra.mxu0 0.0
        %896 = vmatprep.subr.mxu0 0.0
        %897 = vmatpush1.msra.mxu0 0.0
        %898 = vmatprep.subr.mxu0 0.0
        %899 = vmatpush1.msra.mxu0 0.0
        %900 = vmatprep.subr.mxu0 0.0
        %901 = vmatpush1.msra.mxu0 0.0
        %902 = vmatprep.subr.mxu0 0.0
        %903 = vmatpush1.msra.mxu0 0.0
        %904 = vmatprep.subr.mxu0 0.0
        %905 = vmatpush1.msra.mxu0 0.0
        %906 = vmatprep.subr.mxu0 0.0
        %907 = vmatpush1.msra.mxu0 0.0
        %908 = vmatprep.subr.mxu0 0.0
        %909 = vmatpush1.msra.mxu0 0.0
        %910 = vmatprep.subr.mxu0 0.0
        %911 = vmatpush1.msra.mxu0 0.0
        %912 = vmatprep.subr.mxu0 0.0
        %913 = vmatpush1.msra.mxu0 0.0
        %914 = vmatprep.subr.mxu0 0.0
        %915 = vmatpush1.msra.mxu0 0.0
        %916 = vmatprep.subr.mxu0 0.0
        %917 = vmatpush1.msra.mxu0 0.0
        %918 = vmatprep.subr.mxu0 0.0
        %919 = vmatpush1.msra.mxu0 0.0
        %920 = vmatprep.subr.mxu0 0.0
        %921 = vmatpush1.msra.mxu0 0.0
        %922 = vmatprep.subr.mxu0 0.0
        %923 = vmatpush1.msra.mxu0 0.0
        %924 = vmatprep.subr.mxu0 0.0
        %925 = vmatpush1.msra.mxu0 0.0
        %926 = vmatprep.subr.mxu0 0.0
        %927 = vmatpush1.msra.mxu0 0.0
        %928 = vmatprep.subr.mxu0 0.0
        %929 = vmatpush1.msra.mxu0 0.0
        %930 = vmatprep.subr.mxu0 0.0
        %931 = vmatpush1.msra.mxu0 0.0
        %932 = vmatprep.subr.mxu0 0.0
        %933 = vmatpush1.msra.mxu0 0.0
        %934 = vmatprep.subr.mxu0 0.0
        %935 = vmatpush1.msra.mxu0 0.0
        %936 = vmatprep.subr.mxu0 0.0
        %937 = vmatpush1.msra.mxu0 0.0
        %938 = vmatprep.subr.mxu0 0.0
        %939 = vmatpush1.msra.mxu0 0.0
        %940 = vmatprep.mubr.f32.mxu0 0.0
        %941 = vmatmul.mubr.f32.gmra.mrb[0].mxu0 %v874
        %v942 = vpop.f32.mrb[0].mxu0
        %v943 = vadd.f32 %v862, %v942
        %v944 = vpop.f32.mrb[0].mxu0
        %945 = vdwg.mxu0
        %s946 = scalar_lea.vmem [#allocation3], 40
        %v947 = vld [vmem:[%s946] sm:$0xff]
        %949 = vrot.lane.b32.xlu0 %v786, 125
        %v950 = vpop.permute.xlu0 %949
        %951 = vrot.lane.b32.xlu0 %v787, 125
        %v952 = vpop.permute.xlu0 %951
        %v953 = vsel %vm657, %v950, %v952
        %v956 = vsel %vm210, %v947, 0
        %958 = vmatprep.subr.mxu0 0.0
        %959 = vmatpush1.msra.mxu0 %v953
        %960 = vmatprep.subr.mxu0 0.0
        %961 = vmatpush1.msra.mxu0 0.0
        %962 = vmatprep.subr.mxu0 0.0
        %963 = vmatpush1.msra.mxu0 0.0
        %964 = vmatprep.subr.mxu0 0.0
        %965 = vmatpush1.msra.mxu0 0.0
        %966 = vmatprep.subr.mxu0 0.0
        %967 = vmatpush1.msra.mxu0 0.0
        %968 = vmatprep.subr.mxu0 0.0
        %969 = vmatpush1.msra.mxu0 0.0
        %970 = vmatprep.subr.mxu0 0.0
        %971 = vmatpush1.msra.mxu0 0.0
        %972 = vmatprep.subr.mxu0 0.0
        %973 = vmatpush1.msra.mxu0 0.0
        %974 = vmatprep.subr.mxu0 0.0
        %975 = vmatpush1.msra.mxu0 0.0
        %976 = vmatprep.subr.mxu0 0.0
        %977 = vmatpush1.msra.mxu0 0.0
        %978 = vmatprep.subr.mxu0 0.0
        %979 = vmatpush1.msra.mxu0 0.0
        %980 = vmatprep.subr.mxu0 0.0
        %981 = vmatpush1.msra.mxu0 0.0
        %982 = vmatprep.subr.mxu0 0.0
        %983 = vmatpush1.msra.mxu0 0.0
        %984 = vmatprep.subr.mxu0 0.0
        %985 = vmatpush1.msra.mxu0 0.0
        %986 = vmatprep.subr.mxu0 0.0
        %987 = vmatpush1.msra.mxu0 0.0
        %988 = vmatprep.subr.mxu0 0.0
        %989 = vmatpush1.msra.mxu0 0.0
        %990 = vmatprep.subr.mxu0 0.0
        %991 = vmatpush1.msra.mxu0 0.0
        %992 = vmatprep.subr.mxu0 0.0
        %993 = vmatpush1.msra.mxu0 0.0
        %994 = vmatprep.subr.mxu0 0.0
        %995 = vmatpush1.msra.mxu0 0.0
        %996 = vmatprep.subr.mxu0 0.0
        %997 = vmatpush1.msra.mxu0 0.0
        %998 = vmatprep.subr.mxu0 0.0
        %999 = vmatpush1.msra.mxu0 0.0
        %1000 = vmatprep.subr.mxu0 0.0
        %1001 = vmatpush1.msra.mxu0 0.0
        %1002 = vmatprep.subr.mxu0 0.0
        %1003 = vmatpush1.msra.mxu0 0.0
        %1004 = vmatprep.subr.mxu0 0.0
        %1005 = vmatpush1.msra.mxu0 0.0
        %1006 = vmatprep.subr.mxu0 0.0
        %1007 = vmatpush1.msra.mxu0 0.0
        %1008 = vmatprep.subr.mxu0 0.0
        %1009 = vmatpush1.msra.mxu0 0.0
        %1010 = vmatprep.subr.mxu0 0.0
        %1011 = vmatpush1.msra.mxu0 0.0
        %1012 = vmatprep.subr.mxu0 0.0
        %1013 = vmatpush1.msra.mxu0 0.0
        %1014 = vmatprep.subr.mxu0 0.0
        %1015 = vmatpush1.msra.mxu0 0.0
        %1016 = vmatprep.subr.mxu0 0.0
        %1017 = vmatpush1.msra.mxu0 0.0
        %1018 = vmatprep.subr.mxu0 0.0
        %1019 = vmatpush1.msra.mxu0 0.0
        %1020 = vmatprep.subr.mxu0 0.0
        %1021 = vmatpush1.msra.mxu0 0.0
        %1022 = vmatprep.mubr.f32.mxu0 0.0
        %1023 = vmatmul.mubr.f32.gmra.mrb[0].mxu0 %v956
        %v1024 = vpop.f32.mrb[0].mxu0
        %v1025 = vadd.f32 0.0, %v1024
        %v1026 = vpop.f32.mrb[0].mxu0
        %1027 = vdwg.mxu0
        %v1028 = vadd.f32 %v943, %v1025
        %s1029 = scalar_lea.vmem %s2, 8
        %v1030 = vld [vmem:[%s1029] sm:$0xff]
        %1032 = vset.pattern.permute.xlu0 0
        %1033 = vperm.xlu0 %1032, %v1030
        %v1034 = vpop.permute.xlu0 %1033
        %v1036 = vadd.f32 %v1028, %v1034
        %1037 = vst [vmem:[#allocation2 + $0x8] sm:$0xff] %v1036
        %v1038 = vld [vmem:[#allocation2] sm:$0xff]
        %v1039 = vld [vmem:[#allocation2 + $0x8] sm:$0xff]
        %v1040 = vmul.f32 %v1038, -1.5024195e-13
        %v1041 = vmul.f32 %v1039, -1.5024195e-13
        %1044 = vrot.lane.b32.xlu0 %v1040, 3
        %v1045 = vpop.permute.xlu0 %1044
        %1046 = vrot.lane.b32.xlu0 %v1041, 3
        %v1047 = vpop.permute.xlu0 %1046
        %v1048 = vsel %vm598, %v1045, %v1047
        %v1050 = vadd.f32 %v1036, %v1048
        %v1051 = vmul.f32 %v1038, 1.0258677e-09
        %v1052 = vmul.f32 %v1039, 1.0258677e-09
        %1055 = vrot.lane.b32.xlu0 %v1051, 2
        %v1056 = vpop.permute.xlu0 %1055
        %1057 = vrot.lane.b32.xlu0 %v1052, 2
        %v1058 = vpop.permute.xlu0 %1057
        %v1059 = vsel %vm610, %v1056, %v1058
        %v1061 = vadd.f32 %v1050, %v1059
        %v1062 = vmul.f32 %v1038, -1.0359352e-08
        %v1063 = vmul.f32 %v1039, -1.0359352e-08
        %1066 = vrot.lane.b32.xlu0 %v1062, 1
        %v1067 = vpop.permute.xlu0 %1066
        %1068 = vrot.lane.b32.xlu0 %v1063, 1
        %v1069 = vpop.permute.xlu0 %1068
        %v1070 = vsel %vm420, %v1067, %v1069
        %v1072 = vadd.f32 %v1061, %v1070
        %v1073 = vld [vmem:[#allocation2 + $0x10] sm:$0xff]
        %v1074 = vmul.f32 %v1039, -2.7827534e-08
        %v1075 = vmul.f32 %v1073, -2.7827534e-08
        %1078 = vrot.lane.b32.xlu0 %v1074, 127
        %v1079 = vpop.permute.xlu0 %1078
        %1080 = vrot.lane.b32.xlu0 %v1075, 127
        %v1081 = vpop.permute.xlu0 %1080
        %v1082 = vsel %vm503, %v1079, %v1081
        %v1084 = vadd.f32 %v1072, %v1082
        %v1085 = vmul.f32 %v1039, 1.0359352e-08
        %v1086 = vmul.f32 %v1073, 1.0359352e-08
        %1089 = vrot.lane.b32.xlu0 %v1085, 126
        %v1090 = vpop.permute.xlu0 %1089
        %1091 = vrot.lane.b32.xlu0 %v1086, 126
        %v1092 = vpop.permute.xlu0 %1091
        %v1093 = vsel %vm645, %v1090, %v1092
        %v1095 = vadd.f32 %v1084, %v1093
        %v1096 = vmul.f32 %v1039, -9.32888e-11
        %v1097 = vmul.f32 %v1073, -9.32888e-11
        %1100 = vrot.lane.b32.xlu0 %v1096, 125
        %v1101 = vpop.permute.xlu0 %1100
        %1102 = vrot.lane.b32.xlu0 %v1097, 125
        %v1103 = vpop.permute.xlu0 %1102
        %v1104 = vsel %vm657, %v1101, %v1103
        %v1106 = vadd.f32 %v1095, %v1104
        %v1107 = vadd.f32 %v1106, %v661
        %s1108 = scalar_lea.vmem %s3, 16
        %v1109 = vld [vmem:[%s1108] sm:$0xff]
        %1111 = vset.pattern.permute.xlu0 0
        %1112 = vperm.xlu0 %1111, %v1109
        %v1113 = vpop.permute.xlu0 %1112
        %v1115 = vmul.f32 %v1113, %v1107
        %v1116 = vand.u32 2147483647, %v1115
        %vm1117 = vcmp.le.f32.partialorder %v1116, 0.7853982
        %vm1118 = vcmp.lt.s32.totalorder %v1115, 0
        %v1119 = vand.u32 %v1115, 2139095040
        %v1120 = vshrl.u32 %v1119, 23
        %v1121 = vsub.s32 %v1120, 127
        %v1122 = vand.u32 2147483647, %v1115
        %v1123 = vand.u32 %v1122, 8388607
        %v1124 = vor.u32 %v1123, 8388608
        %v1125 = vsub.s32 0, %v1124
        %v1126 = vadd.s32 %v1121, 1
        %vm1127 = vcmp.gt.s32.totalorder %v1126, 0
        %v1128 = vsel %vm1127, %v1126, 0
        %v1129 = vshrl.u32 %v1128, 5
        %v1130 = vand.u32 %v1128, 31
        %v1131 = vsub.s32 32, %v1130
        %v1132 = vshrl.u32 683565275, %v1131
        %v1133 = vshll.u32 683565275, %v1130
        %v1134 = vshrl.u32 2475754826, %v1131
        %v1135 = vor.u32 %v1133, %v1134
        %v1136 = vshll.u32 2475754826, %v1130
        %v1137 = vshrl.u32 2131351028, %v1131
        %v1138 = vor.u32 %v1136, %v1137
        %v1139 = vshll.u32 2131351028, %v1130
        %v1140 = vshrl.u32 2102212464, %v1131
        %v1141 = vor.u32 %v1139, %v1140
        %v1142 = vshll.u32 2102212464, %v1130
        %v1143 = vshrl.u32 920167782, %v1131
        %v1144 = vor.u32 %v1142, %v1143
        %v1145 = vshll.u32 920167782, %v1130
        %v1146 = vshrl.u32 1326507024, %v1131
        %v1147 = vor.u32 %v1145, %v1146
        %vm1148 = vcmp.lt.s32.totalorder %v1129, 1
        %vm1149 = vcmp.lt.s32.totalorder %v1129, 2
        %vm1150 = vcmp.lt.s32.totalorder %v1129, 3
        %vm1151 = vcmp.lt.s32.totalorder %v1129, 4
        %v1152 = vsel %vm1148, %v1132, %v1135
        %v1153 = vsel %vm1151, %v1141, 2102212464
        %v1154 = vsel %vm1150, %v1138, %v1153
        %v1155 = vsel %vm1149, %v1152, %v1154
        %v1156 = vsel %vm1148, %v1135, %v1138
        %v1157 = vsel %vm1151, %v1144, 920167782
        %v1158 = vsel %vm1150, %v1141, %v1157
        %v1159 = vsel %vm1149, %v1156, %v1158
        %v1160 = vsel %vm1148, %v1138, %v1141
        %v1161 = vsel %vm1151, %v1147, 1326507024
        %v1162 = vsel %vm1150, %v1144, %v1161
        %v1163 = vsel %vm1149, %v1160, %v1162
        %v1164 = vshll.u32 %v1124, 8
        %v1165 = vmul.u32.u64.compose %v1164, %v1163
        %v1166 = vextract.low.u32 %v1165
        %v1167 = vextract.high.u32 %v1165
        %v1168 = vmul.u32.u64.compose %v1164, %v1159
        %v1169 = vextract.low.u32 %v1168
        %v1170 = vextract.high.u32 %v1168
        %v1171 = vmul.u32 %v1164, %v1155
        %v1172 = vadd.s32 %v1167, %v1169
        %vm1173 = vc.u32 %v1167, %v1169
        %v1174 = vadd.s32 %v1170, 1
        %v1175 = vsel %vm1173, %v1174, %v1170
        %v1176 = vadd.s32 %v1171, %v1175
        %v1177 = vadd.s32 %v1176, 536870912
        %v1178 = vshrl.u32 %v1177, 30
        %v1179 = vshll.u32 %v1178, 30
        %v1180 = vsub.s32 %v1176, %v1179
        %vm1181 = vcmp.lt.s32.totalorder %v1180, 0
        %v1182 = vsub.s32 0, %v1180
        %v1183 = vsel %vm1181, %v1182, %v1180
        %v1184 = vclz %v1183
        %v1185 = vsub.s32 %v1184, 2
        %vm1186 = vcmp.gt.s32.totalorder 0, %v1185
        %v1187 = vsel %vm1186, 0, %v1185
        %v1188 = vsub.s32 32, %v1187
        %v1189 = vshll.u32 %v1180, %v1187
        %v1190 = vshrl.u32 %v1172, %v1188
        %v1191 = vor.u32 %v1189, %v1190
        %v1192 = vsub.s32 4294967266, %v1187
        %v1193 = vadd.s32 %v1192, 127
        %v1194 = vshll.u32 %v1193, 23
        %v1195 = vor.u32 4788187, %v1194
        %v1196 = vand.u32 2147483647, %v1195
        %v1198 = vcvt.s32.f32 %v1191
        %v1199 = vmul.f32 %v1198, %v1196
        %v1200 = vxor.u32 %v1199, 2147483648
        %v1201 = vsel %vm1118, %v1200, %v1199
        %v1202 = vsub.s32 4, %v1178
        %v1203 = vsel %vm1118, %v1202, %v1178
        %v1204 = vsel %vm1117, %v1115, %v1201
        %v1205 = vsel %vm1117, 0, %v1203
        %v1206 = vcosq.f32.pop %v1204
        %v1207 = vsinq.f32.pop %v1204
        %vm1208 = vweird.f32 %v1115
        %v1209 = vadd.s32 %v1205, 3
        %v1210 = vand.u32 %v1209, 3
        %vm1211 = vcmp.lt.s32.totalorder %v1210, 2
        %vm1212 = vcmp.eq.s32.totalorder %v1210, 0
        %v1213 = vxor.u32 %v1207, 2147483648
        %v1214 = vsel %vm1212, %v1206, %v1213
        %vm1215 = vcmp.eq.s32.totalorder %v1210, 2
        %v1216 = vxor.u32 %v1206, 2147483648
        %v1217 = vsel %vm1215, %v1216, %v1207
        %v1218 = vsel %vm1211, %v1214, %v1217
        %v1219 = vsel %vm1208, nan, %v1218
        %v1220 = vrcp.pop %v1109
        %v1221 = vmul.f32 1.0, %v1220
        %v1222 = vmul.f32 %v1219, %v1219
        %1224 = vset.pattern.permute.xlu0 0
        %1225 = vperm.xlu0 %1224, %v1221
        %v1226 = vpop.permute.xlu0 %1225
        %v1228 = vmul.f32 %v1226, %v1222
        %v1229 = vadd.f32 %v1107, %v1228
        %1230 = vst [vmem:[#allocation2 + $0x8] sm:$0xff] %v1229
        %v1231 = vld [vmem:[#allocation2] sm:$0xff]
        %v1232 = vld [vmem:[#allocation2 + $0x8] sm:$0xff]
        %v1233 = vld [vmem:[#allocation2 + $0x10] sm:$0xff]
        %s1234 = scalar_lea.vmem [#allocation3], 48
        %v1235 = vld [vmem:[%s1234] sm:$0xff]
        %s1236 = scalar_lea.vmem [#allocation3], 56
        %v1237 = vld [vmem:[%s1236] sm:$0xff]
        %v1239 = vsel %vm210, %v1237, 0
        %1241 = vmatprep.subr.mxu0 0.0
        %1242 = vmatpush1.msra.mxu0 %v1229
        %1243 = vmatprep.subr.mxu0 0.0
        %1244 = vmatpush1.msra.mxu0 0.0
        %1245 = vmatprep.subr.mxu0 0.0
        %1246 = vmatpush1.msra.mxu0 0.0
        %1247 = vmatprep.subr.mxu0 0.0
        %1248 = vmatpush1.msra.mxu0 0.0
        %1249 = vmatprep.subr.mxu0 0.0
        %1250 = vmatpush1.msra.mxu0 0.0
        %1251 = vmatprep.subr.mxu0 0.0
        %1252 = vmatpush1.msra.mxu0 0.0
        %1253 = vmatprep.subr.mxu0 0.0
        %1254 = vmatpush1.msra.mxu0 0.0
        %1255 = vmatprep.subr.mxu0 0.0
        %1256 = vmatpush1.msra.mxu0 0.0
        %1257 = vmatprep.subr.mxu0 0.0
        %1258 = vmatpush1.msra.mxu0 0.0
        %1259 = vmatprep.subr.mxu0 0.0
        %1260 = vmatpush1.msra.mxu0 0.0
        %1261 = vmatprep.subr.mxu0 0.0
        %1262 = vmatpush1.msra.mxu0 0.0
        %1263 = vmatprep.subr.mxu0 0.0
        %1264 = vmatpush1.msra.mxu0 0.0
        %1265 = vmatprep.subr.mxu0 0.0
        %1266 = vmatpush1.msra.mxu0 0.0
        %1267 = vmatprep.subr.mxu0 0.0
        %1268 = vmatpush1.msra.mxu0 0.0
        %1269 = vmatprep.subr.mxu0 0.0
        %1270 = vmatpush1.msra.mxu0 0.0
        %1271 = vmatprep.subr.mxu0 0.0
        %1272 = vmatpush1.msra.mxu0 0.0
        %1273 = vmatprep.subr.mxu0 0.0
        %1274 = vmatpush1.msra.mxu0 0.0
        %1275 = vmatprep.subr.mxu0 0.0
        %1276 = vmatpush1.msra.mxu0 0.0
        %1277 = vmatprep.subr.mxu0 0.0
        %1278 = vmatpush1.msra.mxu0 0.0
        %1279 = vmatprep.subr.mxu0 0.0
        %1280 = vmatpush1.msra.mxu0 0.0
        %1281 = vmatprep.subr.mxu0 0.0
        %1282 = vmatpush1.msra.mxu0 0.0
        %1283 = vmatprep.subr.mxu0 0.0
        %1284 = vmatpush1.msra.mxu0 0.0
        %1285 = vmatprep.subr.mxu0 0.0
        %1286 = vmatpush1.msra.mxu0 0.0
        %1287 = vmatprep.subr.mxu0 0.0
        %1288 = vmatpush1.msra.mxu0 0.0
        %1289 = vmatprep.subr.mxu0 0.0
        %1290 = vmatpush1.msra.mxu0 0.0
        %1291 = vmatprep.subr.mxu0 0.0
        %1292 = vmatpush1.msra.mxu0 0.0
        %1293 = vmatprep.subr.mxu0 0.0
        %1294 = vmatpush1.msra.mxu0 0.0
        %1295 = vmatprep.subr.mxu0 0.0
        %1296 = vmatpush1.msra.mxu0 0.0
        %1297 = vmatprep.subr.mxu0 0.0
        %1298 = vmatpush1.msra.mxu0 0.0
        %1299 = vmatprep.subr.mxu0 0.0
        %1300 = vmatpush1.msra.mxu0 0.0
        %1301 = vmatprep.subr.mxu0 0.0
        %1302 = vmatpush1.msra.mxu0 0.0
        %1303 = vmatprep.subr.mxu0 0.0
        %1304 = vmatpush1.msra.mxu0 0.0
        %1305 = vmatprep.mubr.f32.mxu0 0.0
        %1306 = vmatmul.mubr.f32.gmra.mrb[0].mxu0 %v1239
        %v1307 = vpop.f32.mrb[0].mxu0
        %v1308 = vadd.f32 0.0, %v1307
        %v1309 = vpop.f32.mrb[0].mxu0
        %1310 = vdwg.mxu0
        %1313 = vrot.lane.b32.xlu0 %v1231, 5
        %v1314 = vpop.permute.xlu0 %1313
        %1315 = vrot.lane.b32.xlu0 %v1232, 5
        %v1316 = vpop.permute.xlu0 %1315
        %vm1317 = vcmask 39936
        %v1318 = vsel %vm1317, %v1314, %v1316
        %v1321 = vsel %vm210, %v1235, 0
        %1323 = vmatprep.subr.mxu0 0.0
        %1324 = vmatpush1.msra.mxu0 %v1318
        %1325 = vmatprep.subr.mxu0 0.0
        %1326 = vmatpush1.msra.mxu0 0.0
        %1327 = vmatprep.subr.mxu0 0.0
        %1328 = vmatpush1.msra.mxu0 0.0
        %1329 = vmatprep.subr.mxu0 0.0
        %1330 = vmatpush1.msra.mxu0 0.0
        %1331 = vmatprep.subr.mxu0 0.0
        %1332 = vmatpush1.msra.mxu0 0.0
        %1333 = vmatprep.subr.mxu0 0.0
        %1334 = vmatpush1.msra.mxu0 0.0
        %1335 = vmatprep.subr.mxu0 0.0
        %1336 = vmatpush1.msra.mxu0 0.0
        %1337 = vmatprep.subr.mxu0 0.0
        %1338 = vmatpush1.msra.mxu0 0.0
        %1339 = vmatprep.subr.mxu0 0.0
        %1340 = vmatpush1.msra.mxu0 0.0
        %1341 = vmatprep.subr.mxu0 0.0
        %1342 = vmatpush1.msra.mxu0 0.0
        %1343 = vmatprep.subr.mxu0 0.0
        %1344 = vmatpush1.msra.mxu0 0.0
        %1345 = vmatprep.subr.mxu0 0.0
        %1346 = vmatpush1.msra.mxu0 0.0
        %1347 = vmatprep.subr.mxu0 0.0
        %1348 = vmatpush1.msra.mxu0 0.0
        %1349 = vmatprep.subr.mxu0 0.0
        %1350 = vmatpush1.msra.mxu0 0.0
        %1351 = vmatprep.subr.mxu0 0.0
        %1352 = vmatpush1.msra.mxu0 0.0
        %1353 = vmatprep.subr.mxu0 0.0
        %1354 = vmatpush1.msra.mxu0 0.0
        %1355 = vmatprep.subr.mxu0 0.0
        %1356 = vmatpush1.msra.mxu0 0.0
        %1357 = vmatprep.subr.mxu0 0.0
        %1358 = vmatpush1.msra.mxu0 0.0
        %1359 = vmatprep.subr.mxu0 0.0
        %1360 = vmatpush1.msra.mxu0 0.0
        %1361 = vmatprep.subr.mxu0 0.0
        %1362 = vmatpush1.msra.mxu0 0.0
        %1363 = vmatprep.subr.mxu0 0.0
        %1364 = vmatpush1.msra.mxu0 0.0
        %1365 = vmatprep.subr.mxu0 0.0
        %1366 = vmatpush1.msra.mxu0 0.0
        %1367 = vmatprep.subr.mxu0 0.0
        %1368 = vmatpush1.msra.mxu0 0.0
        %1369 = vmatprep.subr.mxu0 0.0
        %1370 = vmatpush1.msra.mxu0 0.0
        %1371 = vmatprep.subr.mxu0 0.0
        %1372 = vmatpush1.msra.mxu0 0.0
        %1373 = vmatprep.subr.mxu0 0.0
        %1374 = vmatpush1.msra.mxu0 0.0
        %1375 = vmatprep.subr.mxu0 0.0
        %1376 = vmatpush1.msra.mxu0 0.0
        %1377 = vmatprep.subr.mxu0 0.0
        %1378 = vmatpush1.msra.mxu0 0.0
        %1379 = vmatprep.subr.mxu0 0.0
        %1380 = vmatpush1.msra.mxu0 0.0
        %1381 = vmatprep.subr.mxu0 0.0
        %1382 = vmatpush1.msra.mxu0 0.0
        %1383 = vmatprep.subr.mxu0 0.0
        %1384 = vmatpush1.msra.mxu0 0.0
        %1385 = vmatprep.subr.mxu0 0.0
        %1386 = vmatpush1.msra.mxu0 0.0
        %1387 = vmatprep.mubr.f32.mxu0 0.0
        %1388 = vmatmul.mubr.f32.gmra.mrb[0].mxu0 %v1321
        %v1389 = vpop.f32.mrb[0].mxu0
        %v1390 = vadd.f32 %v1308, %v1389
        %v1391 = vpop.f32.mrb[0].mxu0
        %1392 = vdwg.mxu0
        %s1393 = scalar_lea.vmem [#allocation3], 64
        %v1394 = vld [vmem:[%s1393] sm:$0xff]
        %1396 = vrot.lane.b32.xlu0 %v1232, 123
        %v1397 = vpop.permute.xlu0 %1396
        %1398 = vrot.lane.b32.xlu0 %v1233, 123
        %v1399 = vpop.permute.xlu0 %1398
        %vm1400 = vcmask 1006592
        %v1401 = vsel %vm1400, %v1397, %v1399
        %v1404 = vsel %vm210, %v1394, 0
        %1406 = vmatprep.subr.mxu0 0.0
        %1407 = vmatpush1.msra.mxu0 %v1401
        %1408 = vmatprep.subr.mxu0 0.0
        %1409 = vmatpush1.msra.mxu0 0.0
        %1410 = vmatprep.subr.mxu0 0.0
        %1411 = vmatpush1.msra.mxu0 0.0
        %1412 = vmatprep.subr.mxu0 0.0
        %1413 = vmatpush1.msra.mxu0 0.0
        %1414 = vmatprep.subr.mxu0 0.0
        %1415 = vmatpush1.msra.mxu0 0.0
        %1416 = vmatprep.subr.mxu0 0.0
        %1417 = vmatpush1.msra.mxu0 0.0
        %1418 = vmatprep.subr.mxu0 0.0
        %1419 = vmatpush1.msra.mxu0 0.0
        %1420 = vmatprep.subr.mxu0 0.0
        %1421 = vmatpush1.msra.mxu0 0.0
        %1422 = vmatprep.subr.mxu0 0.0
        %1423 = vmatpush1.msra.mxu0 0.0
        %1424 = vmatprep.subr.mxu0 0.0
        %1425 = vmatpush1.msra.mxu0 0.0
        %1426 = vmatprep.subr.mxu0 0.0
        %1427 = vmatpush1.msra.mxu0 0.0
        %1428 = vmatprep.subr.mxu0 0.0
        %1429 = vmatpush1.msra.mxu0 0.0
        %1430 = vmatprep.subr.mxu0 0.0
        %1431 = vmatpush1.msra.mxu0 0.0
        %1432 = vmatprep.subr.mxu0 0.0
        %1433 = vmatpush1.msra.mxu0 0.0
        %1434 = vmatprep.subr.mxu0 0.0
        %1435 = vmatpush1.msra.mxu0 0.0
        %1436 = vmatprep.subr.mxu0 0.0
        %1437 = vmatpush1.msra.mxu0 0.0
        %1438 = vmatprep.subr.mxu0 0.0
        %1439 = vmatpush1.msra.mxu0 0.0
        %1440 = vmatprep.subr.mxu0 0.0
        %1441 = vmatpush1.msra.mxu0 0.0
        %1442 = vmatprep.subr.mxu0 0.0
        %1443 = vmatpush1.msra.mxu0 0.0
        %1444 = vmatprep.subr.mxu0 0.0
        %1445 = vmatpush1.msra.mxu0 0.0
        %1446 = vmatprep.subr.mxu0 0.0
        %1447 = vmatpush1.msra.mxu0 0.0
        %1448 = vmatprep.subr.mxu0 0.0
        %1449 = vmatpush1.msra.mxu0 0.0
        %1450 = vmatprep.subr.mxu0 0.0
        %1451 = vmatpush1.msra.mxu0 0.0
        %1452 = vmatprep.subr.mxu0 0.0
        %1453 = vmatpush1.msra.mxu0 0.0
        %1454 = vmatprep.subr.mxu0 0.0
        %1455 = vmatpush1.msra.mxu0 0.0
        %1456 = vmatprep.subr.mxu0 0.0
        %1457 = vmatpush1.msra.mxu0 0.0
        %1458 = vmatprep.subr.mxu0 0.0
        %1459 = vmatpush1.msra.mxu0 0.0
        %1460 = vmatprep.subr.mxu0 0.0
        %1461 = vmatpush1.msra.mxu0 0.0
        %1462 = vmatprep.subr.mxu0 0.0
        %1463 = vmatpush1.msra.mxu0 0.0
        %1464 = vmatprep.subr.mxu0 0.0
        %1465 = vmatpush1.msra.mxu0 0.0
        %1466 = vmatprep.subr.mxu0 0.0
        %1467 = vmatpush1.msra.mxu0 0.0
        %1468 = vmatprep.subr.mxu0 0.0
        %1469 = vmatpush1.msra.mxu0 0.0
        %1470 = vmatprep.mubr.f32.mxu0 0.0
        %1471 = vmatmul.mubr.f32.gmra.mrb[0].mxu0 %v1404
        %v1472 = vpop.f32.mrb[0].mxu0
        %v1473 = vadd.f32 0.0, %v1472
        %v1474 = vpop.f32.mrb[0].mxu0
        %1475 = vdwg.mxu0
        %v1476 = vadd.f32 %v1390, %v1473
        %s1477 = scalar_lea.vmem %s2, 16
        %v1478 = vld [vmem:[%s1477] sm:$0xff]
        %1480 = vset.pattern.permute.xlu0 0
        %1481 = vperm.xlu0 %1480, %v1478
        %v1482 = vpop.permute.xlu0 %1481
        %v1484 = vadd.f32 %v1476, %v1482
        %1485 = vst [vmem:[#allocation2 + $0x8] sm:$0xff] %v1484
        %v1486 = vld [vmem:[#allocation2] sm:$0xff]
        %v1487 = vld [vmem:[#allocation2 + $0x8] sm:$0xff]
        %v1488 = vmul.f32 %v1486, -1.5024195e-13
        %v1489 = vmul.f32 %v1487, -1.5024195e-13
        %1492 = vrot.lane.b32.xlu0 %v1488, 3
        %v1493 = vpop.permute.xlu0 %1492
        %1494 = vrot.lane.b32.xlu0 %v1489, 3
        %v1495 = vpop.permute.xlu0 %1494
        %v1496 = vsel %vm598, %v1493, %v1495
        %v1498 = vadd.f32 %v1484, %v1496
        %v1499 = vmul.f32 %v1486, 1.0258677e-09
        %v1500 = vmul.f32 %v1487, 1.0258677e-09
        %1503 = vrot.lane.b32.xlu0 %v1499, 2
        %v1504 = vpop.permute.xlu0 %1503
        %1505 = vrot.lane.b32.xlu0 %v1500, 2
        %v1506 = vpop.permute.xlu0 %1505
        %v1507 = vsel %vm610, %v1504, %v1506
        %v1509 = vadd.f32 %v1498, %v1507
        %v1510 = vmul.f32 %v1486, -1.0359352e-08
        %v1511 = vmul.f32 %v1487, -1.0359352e-08
        %1514 = vrot.lane.b32.xlu0 %v1510, 1
        %v1515 = vpop.permute.xlu0 %1514
        %1516 = vrot.lane.b32.xlu0 %v1511, 1
        %v1517 = vpop.permute.xlu0 %1516
        %v1518 = vsel %vm420, %v1515, %v1517
        %v1520 = vadd.f32 %v1509, %v1518
        %v1521 = vld [vmem:[#allocation2 + $0x10] sm:$0xff]
        %v1522 = vmul.f32 %v1487, -2.7827534e-08
        %v1523 = vmul.f32 %v1521, -2.7827534e-08
        %1526 = vrot.lane.b32.xlu0 %v1522, 127
        %v1527 = vpop.permute.xlu0 %1526
        %1528 = vrot.lane.b32.xlu0 %v1523, 127
        %v1529 = vpop.permute.xlu0 %1528
        %v1530 = vsel %vm503, %v1527, %v1529
        %v1532 = vadd.f32 %v1520, %v1530
        %v1533 = vmul.f32 %v1487, 1.0359352e-08
        %v1534 = vmul.f32 %v1521, 1.0359352e-08
        %1537 = vrot.lane.b32.xlu0 %v1533, 126
        %v1538 = vpop.permute.xlu0 %1537
        %1539 = vrot.lane.b32.xlu0 %v1534, 126
        %v1540 = vpop.permute.xlu0 %1539
        %v1541 = vsel %vm645, %v1538, %v1540
        %v1543 = vadd.f32 %v1532, %v1541
        %v1544 = vmul.f32 %v1487, -9.32888e-11
        %v1545 = vmul.f32 %v1521, -9.32888e-11
        %1548 = vrot.lane.b32.xlu0 %v1544, 125
        %v1549 = vpop.permute.xlu0 %1548
        %1550 = vrot.lane.b32.xlu0 %v1545, 125
        %v1551 = vpop.permute.xlu0 %1550
        %v1552 = vsel %vm657, %v1549, %v1551
        %v1554 = vadd.f32 %v1543, %v1552
        %v1555 = vadd.f32 %v1554, %v1107
        %1556 = vst [vmem:[%s203] sm:$0xff] %v1555
        %s1557 = sand.u32 %s116, 1
        %s1558 = scalar_lea.sflag [#allocation5], %s1557
        %s1559 = sand.u32 %s116, 1
        %s1560 = smul.addr %s1559, 8
        %s1561 = scalar_lea.vmem [#allocation6], %s1560
        // Predicated region
        $region41: #{tpu_custom_call.1} parent=35 // pred_check
          %p1562 = pneg %p126
        $region42: #{tpu_custom_call.1} parent=35 // pred_check_branch
          %1564 = sbr.rel (%p1562) target = $region44
        $region43: #{tpu_custom_call.1} parent=35 // pred_region
          %s1566 = ssub.s32 128, 128
          %1567 = vsyncadd %s1558, %s1566
          %s1568 = smul.addr %s19, 128
          %s1569 = scalar_lea.hbm %s4, %s1568
          %s1571 = sshll.u32 %s1561, 4
          %s1572 = int_to_ptr.vmem [resolvable:$true] %s1571
          %1574 = dma.vmem_to_hbm [thread:$0]  %s1572, 128, %s1569, %s1558
        $region44: #{tpu_custom_call.1} parent=35 // pred_fallthru
          _
      $region36: #{tpu_custom_call.1} parent=5 // pred_fallthru
        _
      %p1575 = scmp.le.s32.totalorder 2, %s14
      // Predicated region
      $region45: #{tpu_custom_call.1} parent=5 // pred_check
        %p1576 = pneg %p1575
      $region46: #{tpu_custom_call.1} parent=5 // pred_check_branch
        %1578 = sbr.rel (%p1576) target = $region48
      $region47: #{tpu_custom_call.1} parent=5 // pred_region
        %s1579 = ssub.s32 %s14, 2
        // Predicated region
        $region49: #{tpu_custom_call.1} parent=47 // pred_check
          %p1580 = pneg %p132
        $region50: #{tpu_custom_call.1} parent=47 // pred_check_branch
          %1582 = sbr.rel (%p1580) target = $region52
        $region51: #{tpu_custom_call.1} parent=47 // pred_region
          %s1583 = sand.u32 %s117, 1
          %s1584 = scalar_lea.sflag [#allocation5], %s1583
          %s1585 = sand.u32 %s117, 1
          %s1586 = smul.addr %s1585, 8
          %s1587 = scalar_lea.vmem [#allocation6], %s1586
          %1588 = dma.done %s1584, 128
        $region52: #{tpu_custom_call.1} parent=47 // pred_fallthru
          _
      $region48: #{tpu_custom_call.1} parent=5 // pred_fallthru
        _
    $region6: #{tpu_custom_call.1} parent=1 // loop_footer
      %s18 = sadd.s32 1, %s14
    $region7: #{tpu_custom_call.1} parent=1 // loop_footer_branch
      %13 = sbr.rel target = $region3
    $region8: #{tpu_custom_call.1} parent=1 // loop_exit
      _
    %1589 = vsyncpa [#allocation4], 1
    %s1590 = scalar_lea.sflag [#allocation4], 1
    %1591 = vsyncpa %s1590, 1
    %1592 = vsyncpa [#allocation5], 1
    %s1593 = scalar_lea.sflag [#allocation5], 1
    %1594 = vsyncpa %s1593, 1

</llo_original>
